<compile_context>
chip_gen: v7x
topology: tpu7x:2x2x1
jax: 0.10.0
libtpu: 0.0.40
codegen_flags: <defaults>
</compile_context>

<pallas_src>
import functools

import jax
import jax.numpy as jnp
from jax.experimental import pallas as pl
from jax.experimental.pallas import tpu as pltpu


def _round_up(a: int, b: int) -> int:
    return (a + b - 1) // b * b


def _vmem_capacity_bytes(default=64 << 20) -> int:
    """Physical VMEM per core; conservative 64 MiB fallback if query fails."""
    try:
        info = pltpu.get_tpu_info()
        for attr in ("vmem_capacity_bytes", "vmem_bytes", "vmem_size_bytes"):
            v = getattr(info, attr, None)
            if v:
                return int(v)
    except Exception:
        pass
    return default


def _budgets():
    """(weight_vmem_budget, vmem_limit_cap) tuned per TPU generation."""
    cap = _vmem_capacity_bytes()
    if cap >= (100 << 20):        # v5e / v6e: 128 MiB physical VMEM
        return 48 << 20, 100 << 20
    return 14 << 20, 52 << 20     # v7x: 64 MiB per TensorCore


def choose_hidden_tile(dim, hidden, dtype_bytes, weight_vmem_budget=None):
    """Largest hidden chunk (multiple of 128) whose double-buffered weight
    blocks (W1+W2+W3 chunks) fit in the weight VMEM budget. If the whole
    hidden dim fits, the wrapper takes the weights-resident fast path."""
    if weight_vmem_budget is None:
        weight_vmem_budget, _ = _budgets()
    hidden_ru = _round_up(hidden, 128)
    tn = (weight_vmem_budget // (6 * dim * dtype_bytes)) // 128 * 128
    return int(max(128, min(tn, hidden_ru)))


def prepare_weights(w1, w2, w3, tn, compute_dtype=None):
    """One-time weight preparation (do this once, not per forward call).

    w1, w2: (hidden, dim)  -- lin1.weight / lin2.weight (PyTorch layout)
    w3    : (dim, hidden)  -- lin3.weight
    Returns (w12, w3t):
      w12: (dim, 2*hidden_pad)  per-chunk interleaved [W1.T chunk | W2.T chunk]
      w3t: (hidden_pad, dim)    W3.T, hidden zero-padded to a multiple of tn.
    Zero padding of the hidden axis contributes exactly 0 to the output.
    """
    hidden, dim = w1.shape
    if compute_dtype is not None:
        w1 = w1.astype(compute_dtype)
        w2 = w2.astype(compute_dtype)
        w3 = w3.astype(compute_dtype)
    hidden_pad = _round_up(hidden, tn)
    ph = hidden_pad - hidden
    w1t = jnp.pad(w1.T, ((0, 0), (0, ph)))          # (dim, hidden_pad)
    w2t = jnp.pad(w2.T, ((0, 0), (0, ph)))          # (dim, hidden_pad)
    w3t = jnp.pad(w3.T, ((0, ph), (0, 0)))          # (hidden_pad, dim)
    nj = hidden_pad // tn
    w12 = jnp.stack(
        [w1t.reshape(dim, nj, tn), w2t.reshape(dim, nj, tn)], axis=2
    ).reshape(dim, nj * 2 * tn)                     # (dim, 2*hidden_pad)
    return w12, w3t


def _reglu_kernel_single(x_ref, w12_ref, w3_ref, o_ref, *, tn):
    """Weights-resident path: whole hidden dim in one chunk, no accumulator."""
    x = x_ref[...]
    h12 = jnp.dot(x, w12_ref[...], preferred_element_type=jnp.float32)
    h = jnp.maximum(h12[:, :tn], 0.0) * h12[:, tn:]
    o_ref[...] = jnp.dot(h.astype(w3_ref.dtype), w3_ref[...],
                         preferred_element_type=jnp.float32).astype(o_ref.dtype)


def _reglu_kernel_multi(x_ref, w12_ref, w3_ref, o_ref, acc_ref, *, tn):
    """Hidden-tiled path: stream [W1.T|W2.T] and W3.T chunks, accumulate f32."""
    j = pl.program_id(1)
    x = x_ref[...]
    h12 = jnp.dot(x, w12_ref[...], preferred_element_type=jnp.float32)
    h = jnp.maximum(h12[:, :tn], 0.0) * h12[:, tn:]
    partial = jnp.dot(h.astype(w3_ref.dtype), w3_ref[...],
                      preferred_element_type=jnp.float32)

    @pl.when(j == 0)
    def _():
        acc_ref[...] = partial       # direct write, saves a zero-store + add

    @pl.when(j > 0)
    def _():
        acc_ref[...] += partial

    @pl.when(j == pl.num_programs(1) - 1)
    def _():
        o_ref[...] = acc_ref[...].astype(o_ref.dtype)


@functools.partial(jax.jit, static_argnames=("tn", "tm", "m_pad", "vmem_limit"))
def _forward(x2d, w12, w3t, *, tn, tm, m_pad, vmem_limit):
    m, dim = x2d.shape
    hidden_pad = w3t.shape[0]
    nj = hidden_pad // tn
    n_token_tiles = m_pad // tm

    if m_pad != m:
        x2d = jnp.pad(x2d, ((0, m_pad - m), (0, 0)))

    wbytes = jnp.dtype(w12.dtype).itemsize
    xbytes = jnp.dtype(x2d.dtype).itemsize
    cost = pl.CostEstimate(
        flops=6 * m_pad * dim * hidden_pad,
        transcendentals=0,
        bytes_accessed=(m_pad * dim * xbytes * 2
                        + (w12.size + w3t.size) * wbytes
                        * (n_token_tiles if nj > 1 else 1)),
    )

    if nj == 1:
        # Weights-resident: constant weight block index -> DMA'd once.
        grid_spec = pltpu.PrefetchScalarGridSpec(
            num_scalar_prefetch=0,
            grid=(n_token_tiles,),
            in_specs=[
                pl.BlockSpec((tm, dim), lambda i: (i, 0)),          # x tile
                pl.BlockSpec((dim, 2 * tn), lambda i: (0, 0)),      # [W1|W2]
                pl.BlockSpec((tn, dim), lambda i: (0, 0)),          # W3.T
            ],
            out_specs=pl.BlockSpec((tm, dim), lambda i: (i, 0)),
        )
        kernel = functools.partial(_reglu_kernel_single, tn=tn)
        dims = ("parallel",)
    else:
        grid_spec = pltpu.PrefetchScalarGridSpec(
            num_scalar_prefetch=0,
            grid=(n_token_tiles, nj),
            in_specs=[
                pl.BlockSpec((tm, dim), lambda i, j: (i, 0)),       # x tile
                pl.BlockSpec((dim, 2 * tn), lambda i, j: (0, j)),   # [W1|W2] chunk
                pl.BlockSpec((tn, dim), lambda i, j: (j, 0)),       # W3.T chunk
            ],
            out_specs=pl.BlockSpec((tm, dim), lambda i, j: (i, 0)),
            scratch_shapes=[pltpu.VMEM((tm, dim), jnp.float32)],
        )
        kernel = functools.partial(_reglu_kernel_multi, tn=tn)
        dims = ("parallel", "arbitrary")

    out2d = pl.pallas_call(
        kernel,
        out_shape=jax.ShapeDtypeStruct((m_pad, dim), x2d.dtype),
        grid_spec=grid_spec,
        compiler_params=pltpu.CompilerParams(
            dimension_semantics=dims,
            vmem_limit_bytes=vmem_limit,
        ),
        cost_estimate=cost,
    )(x2d, w12, w3t)

    if m_pad != m:
        out2d = out2d[:m]
    return out2d


def feed_forward_reglu(x, w12, w3t, *, tn, tm=512):
    """Pallas ReGLU FFN on prepared weights.

    x  : (..., dim)
    w12: (dim, 2*hidden_pad)  from prepare_weights
    w3t: (hidden_pad, dim)    from prepare_weights
    returns: same shape/dtype as x.
    """
    orig_shape = x.shape
    orig_dtype = x.dtype
    dim = orig_shape[-1]
    hidden_pad = w3t.shape[0]
    assert w12.shape == (dim, 2 * hidden_pad)
    assert hidden_pad % tn == 0
    nj = hidden_pad // tn

    x2d = x.reshape(-1, dim).astype(w12.dtype)   # compute in the weight dtype
    m = x2d.shape[0]

    # Token tile: multiple of 128, never below 128 (pad ragged M up instead).
    tm = _round_up(max(128, tm), 128)
    tm = max(128, min(tm, _round_up(m, 128)))
    m_pad = _round_up(m, tm)
    # In the weights-resident path, split a lone token tile so the parallel
    # axis can shard across both v7x TensorCores (weights are resident -> free).
    if nj == 1 and m_pad // tm == 1 and m_pad >= 256:
        tm = m_pad // 2
    n_token_tiles = m_pad // tm

    # Generation-aware VMEM limit; model weight chunks (double-buffered),
    # x/out tiles, the f32 accumulator (multi-chunk only) and the f32
    # h12/h intermediates.
    _, limit_cap = _budgets()
    wbytes = jnp.dtype(w12.dtype).itemsize
    acc_bytes = tm * dim * 4 if nj > 1 else 0
    interm_bytes = tm * 3 * tn * 4
    vmem_est = (2 * (dim * 2 * tn + tn * dim) * wbytes
                + 2 * tm * dim * wbytes
                + 2 * tm * dim * wbytes
                + acc_bytes + interm_bytes)
    vmem_limit = int(max(min(int(1.25 * vmem_est), limit_cap), 32 << 20))

    out2d = _forward(x2d, w12, w3t, tn=tn, tm=tm, m_pad=m_pad,
                     vmem_limit=vmem_limit)
    return out2d.astype(orig_dtype).reshape(orig_shape)


def init_params(key, dim, multiplier, dtype=jnp.float32):
    """Deterministic init matching the PyTorch module's parameter shapes.

    nn.Linear default init is U(-1/sqrt(fan_in), 1/sqrt(fan_in)).
    """
    hidden = multiplier * ((dim + multiplier - 1) // multiplier)
    k1, k2, k3 = jax.random.split(key, 3)
    b1 = 1.0 / (dim ** 0.5)
    b3 = 1.0 / (hidden ** 0.5)
    w1 = jax.random.uniform(k1, (hidden, dim), dtype, minval=-b1, maxval=b1)
    w2 = jax.random.uniform(k2, (hidden, dim), dtype, minval=-b1, maxval=b1)
    w3 = jax.random.uniform(k3, (dim, hidden), dtype, minval=-b3, maxval=b3)
    return w1, w2, w3


if __name__ == "__main__":
    # Small demo: dim=256, multiplier=3 -> hidden = 258 (exercises hidden padding).
    batch, seq, dim, multiplier = 2, 8, 256, 3
    key = jax.random.PRNGKey(0)
    kx, kp = jax.random.split(key)

    x = jax.random.normal(kx, (batch, seq, dim), dtype=jnp.float32)
    w1, w2, w3 = init_params(kp, dim, multiplier)

    # Pure-JAX reference of the forward semantics (PyTorch weight layout).
    ref = jnp.einsum(
        "bsh,dh->bsd",
        jnp.maximum(jnp.einsum("bsd,hd->bsh", x, w1), 0.0)
        * jnp.einsum("bsd,hd->bsh", x, w2),
        w3)

    # Path 1: auto tile -> weights fit VMEM -> weights-resident single-chunk kernel.
    tn_auto = choose_hidden_tile(dim, w1.shape[0], dtype_bytes=4)
    w12_a, w3t_a = prepare_weights(w1, w2, w3, tn_auto)   # one-time layout prep
    out_a = jax.block_until_ready(feed_forward_reglu(x, w12_a, w3t_a, tn=tn_auto))

    # Path 2: forced tn=128 -> 3 hidden chunks -> streaming multi-chunk kernel.
    tn_small = 128
    w12_b, w3t_b = prepare_weights(w1, w2, w3, tn_small)
    out_b = jax.block_until_ready(feed_forward_reglu(x, w12_b, w3t_b, tn=tn_small))

    assert out_a.shape == x.shape and out_b.shape == x.shape
    assert jnp.allclose(out_a, ref, atol=2e-3, rtol=2e-3), (
        float(jnp.max(jnp.abs(out_a - ref))))
    assert jnp.allclose(out_b, ref, atol=2e-3, rtol=2e-3), (
        float(jnp.max(jnp.abs(out_b - ref))))

    print("KERNEL_OK")
</pallas_src>

<mosaic_0001>
module attributes {stable_mosaic.version = 11 : i64} {
  func.func @_reglu_kernel_single(%arg0: i32, %arg1: memref<128x256xf32, #tpu.memory_space<vmem>>, %arg2: memref<256x768xf32, #tpu.memory_space<vmem>>, %arg3: memref<384x256xf32, #tpu.memory_space<vmem>>, %arg4: memref<128x256xf32, #tpu.memory_space<vmem>>) attributes {dimension_semantics = [#tpu.dimension_semantics<parallel>], iteration_bounds = array<i64: 1>, scalar_prefetch = 0 : i64, scratch_operands = 0 : i64, tpu.core_type = #tpu.core_type<tc>, window_params = [{transform_indices = @transform_0, window_bounds = array<i64: 128, 256>}, {pipeline_mode = #tpu.pipeline_mode<synchronous>, transform_indices = @transform_1, window_bounds = array<i64: 256, 768>}, {pipeline_mode = #tpu.pipeline_mode<synchronous>, transform_indices = @transform_2, window_bounds = array<i64: 384, 256>}, {transform_indices = @transform_3, window_bounds = array<i64: 128, 256>}]} {
    %c0 = arith.constant 0 : index
    %c0_0 = arith.constant 0 : index
    %0 = vector.load %arg1[%c0, %c0_0] : memref<128x256xf32, #tpu.memory_space<vmem>>, vector<128x256xf32>
    %c0_1 = arith.constant 0 : index
    %c0_2 = arith.constant 0 : index
    %1 = vector.load %arg2[%c0_1, %c0_2] : memref<256x768xf32, #tpu.memory_space<vmem>>, vector<256x768xf32>
    %cst = arith.constant dense<0.000000e+00> : vector<128x768xf32>
    %2 = tpu.matmul %0, %1, %cst {dimension_numbers = #tpu.dot_dimension_numbers<[1], [0], [0], [1], [0, 0, 1, 1], [], []>} : vector<128x256xf32>, vector<256x768xf32>, vector<128x768xf32> -> vector<128x768xf32>
    %3 = vector.extract_strided_slice %2 {offsets = [0, 0], sizes = [128, 384], strides = [1, 1]} : vector<128x768xf32> to vector<128x384xf32>
    %cst_3 = arith.constant 0.000000e+00 : f32
    %4 = vector.broadcast %cst_3 : f32 to vector<128x384xf32>
    %5 = arith.maximumf %3, %4 : vector<128x384xf32>
    %6 = vector.extract_strided_slice %2 {offsets = [0, 384], sizes = [128, 384], strides = [1, 1]} : vector<128x768xf32> to vector<128x384xf32>
    %7 = arith.mulf %5, %6 : vector<128x384xf32>
    %c0_4 = arith.constant 0 : index
    %c0_5 = arith.constant 0 : index
    %8 = vector.load %arg3[%c0_4, %c0_5] : memref<384x256xf32, #tpu.memory_space<vmem>>, vector<384x256xf32>
    %cst_6 = arith.constant dense<0.000000e+00> : vector<128x256xf32>
    %9 = tpu.matmul %7, %8, %cst_6 {dimension_numbers = #tpu.dot_dimension_numbers<[1], [0], [0], [1], [0, 0, 1, 1], [], []>} : vector<128x384xf32>, vector<384x256xf32>, vector<128x256xf32> -> vector<128x256xf32>
    %c0_7 = arith.constant 0 : index
    %c0_8 = arith.constant 0 : index
    %10 = vector.load %arg4[%c0_7, %c0_8] : memref<128x256xf32, #tpu.memory_space<vmem>>, vector<128x256xf32>
    tpu.vector_store %arg4[%c0_7, %c0_8], %9 {strides = array<i32>} : memref<128x256xf32, #tpu.memory_space<vmem>>, vector<128x256xf32>,
    return
  }
  func.func @transform_0(%arg0: i32) -> (i32, i32) {
    %c0_i32 = arith.constant 0 : i32
    %c0_i32_0 = arith.constant 0 : i32
    return %arg0, %c0_i32 : i32, i32
  }
  func.func @transform_1(%arg0: i32) -> (i32, i32) {
    %c0_i32 = arith.constant 0 : i32
    %c0_i32_0 = arith.constant 0 : i32
    %c0_i32_1 = arith.constant 0 : i32
    return %c0_i32, %c0_i32_0 : i32, i32
  }
  func.func @transform_2(%arg0: i32) -> (i32, i32) {
    %c0_i32 = arith.constant 0 : i32
    %c0_i32_0 = arith.constant 0 : i32
    %c0_i32_1 = arith.constant 0 : i32
    return %c0_i32, %c0_i32_0 : i32, i32
  }
  func.func @transform_3(%arg0: i32) -> (i32, i32) {
    %c0_i32 = arith.constant 0 : i32
    %c0_i32_0 = arith.constant 0 : i32
    return %arg0, %c0_i32 : i32, i32
  }
}

</mosaic_0001>

<llo_original>
// kernel: _forward.1
$region0: #{_forward.1}
  #allocation0 [shape = 'u32[]', space=smem, size = 0x4, offset = 0x4, fixed_abs, tag = 'smem constant byte address 0x4 - core index']
  #allocation1 [shape = 'u32[144,128]{1,0:T(1,128)}', space=vmem, size = 0x12000, scoped, tag = 'internal scratch']
  %s0 = inlined_call_operand.vmem [shape: f32[128,256], index: 0, kind: input, shape index: {}]
  %s1 = inlined_call_operand.hbm [shape: f32[256,768], index: 1, kind: input, shape index: {}]
  %s2 = inlined_call_operand.hbm [shape: f32[384,256], index: 2, kind: input, shape index: {}]
  %s3 = inlined_call_operand.vmem [shape: f32[128,256], index: 3, kind: output, shape index: {}]
  %s4 = sld [smem:[#allocation0]]
  $region30: #{_forward.1} parent=0
    _
  %s6 = ssub.s32 1, %s4
  %s7 = scalar_select 0, %s6, %s4
  $region1: #{_forward.1} parent=0
    #allocation2 [shape = 'u8[786432]{0}', space=vmem, size = 0xc0000, scoped, tag = 'input window, operand 1, single buffered']
    #allocation3 [shape = 's32[1]{0}', space=sflag, size = 0x4, scoped, tag = 'scoped memory for _forward.1']
    #allocation4 [shape = 'u8[393216]{0}', space=vmem, size = 0x60000, scoped, tag = 'input window, operand 2, single buffered']
    #allocation5 [shape = 's32[1]{0}', space=sflag, size = 0x4, scoped, tag = 'scoped memory for _forward.1']
    %8 = vsyncpa [#allocation3], 0
    %9 = vsyncpa [#allocation5], 0
    // Predicated region
    $region2: #{_forward.1} parent=1 // pred_check
      _
    $region3: #{_forward.1} parent=1 // pred_check_branch
      %11 = sbr.rel (0) target = $region5
    $region4: #{_forward.1} parent=1 // pred_region
      _
    $region5: #{_forward.1} parent=1 // pred_fallthru
      _
    // Predicated region
    $region6: #{_forward.1} parent=1 // pred_check
      _
    $region7: #{_forward.1} parent=1 // pred_check_branch
      %13 = sbr.rel (0) target = $region9
    $region8: #{_forward.1} parent=1 // pred_region
      %s15 = ssub.s32 24576, 24576
      %16 = vsyncadd [#allocation3], %s15
      %s17 = sshll.u32 [#allocation2], 4
      %s18 = int_to_ptr.vmem [resolvable:$true] %s17
      %23 = dma.hbm_to_vmem [thread:$0]  %s1, 24576, %s18, [#allocation3], 768, 768, 48
    $region9: #{_forward.1} parent=1 // pred_fallthru
      _
    // Predicated region
    $region10: #{_forward.1} parent=1 // pred_check
      _
    $region11: #{_forward.1} parent=1 // pred_check_branch
      %25 = sbr.rel (0) target = $region13
    $region12: #{_forward.1} parent=1 // pred_region
      %s27 = ssub.s32 12288, 12288
      %28 = vsyncadd [#allocation5], %s27
      %s29 = sshll.u32 [#allocation4], 4
      %s30 = int_to_ptr.vmem [resolvable:$true] %s29
      %35 = dma.hbm_to_vmem [thread:$0]  %s2, 12288, %s30, [#allocation5], 256, 256, 16
    $region13: #{_forward.1} parent=1 // pred_fallthru
      _
    // Predicated region
    $region14: #{_forward.1} parent=1 // pred_check
      _
    $region15: #{_forward.1} parent=1 // pred_check_branch
      %37 = sbr.rel (0) target = $region17
    $region16: #{_forward.1} parent=1 // pred_region
      %38 = dma.done [#allocation3], 24576
    $region17: #{_forward.1} parent=1 // pred_fallthru
      _
    // Predicated region
    $region18: #{_forward.1} parent=1 // pred_check
      _
    $region19: #{_forward.1} parent=1 // pred_check_branch
      %40 = sbr.rel (0) target = $region21
    $region20: #{_forward.1} parent=1 // pred_region
      %41 = dma.done [#allocation5], 12288
    $region21: #{_forward.1} parent=1 // pred_fallthru
      _
    %v42 = vld [vmem:[%s0] sm:$0xff]
    %v43 = vld [vmem:[%s0 + $0x8] sm:$0xff]
    %v44 = vld [vmem:[%s0 + $0x10] sm:$0xff]
    %v45 = vld [vmem:[%s0 + $0x18] sm:$0xff]
    %v46 = vld [vmem:[%s0 + $0x20] sm:$0xff]
    %v47 = vld [vmem:[%s0 + $0x28] sm:$0xff]
    %v48 = vld [vmem:[%s0 + $0x30] sm:$0xff]
    %v49 = vld [vmem:[%s0 + $0x38] sm:$0xff]
    %v50 = vld [vmem:[%s0 + $0x40] sm:$0xff]
    %v51 = vld [vmem:[%s0 + $0x48] sm:$0xff]
    %v52 = vld [vmem:[%s0 + $0x50] sm:$0xff]
    %v53 = vld [vmem:[%s0 + $0x58] sm:$0xff]
    %v54 = vld [vmem:[%s0 + $0x60] sm:$0xff]
    %v55 = vld [vmem:[%s0 + $0x68] sm:$0xff]
    %v56 = vld [vmem:[%s0 + $0x70] sm:$0xff]
    %v57 = vld [vmem:[%s0 + $0x78] sm:$0xff]
    %v58 = vld [vmem:[%s0 + $0x80] sm:$0xff]
    %v59 = vld [vmem:[%s0 + $0x88] sm:$0xff]
    %v60 = vld [vmem:[%s0 + $0x90] sm:$0xff]
    %v61 = vld [vmem:[%s0 + $0x98] sm:$0xff]
    %v62 = vld [vmem:[%s0 + $0xa0] sm:$0xff]
    %v63 = vld [vmem:[%s0 + $0xa8] sm:$0xff]
    %v64 = vld [vmem:[%s0 + $0xb0] sm:$0xff]
    %v65 = vld [vmem:[%s0 + $0xb8] sm:$0xff]
    %v66 = vld [vmem:[%s0 + $0xc0] sm:$0xff]
    %v67 = vld [vmem:[%s0 + $0xc8] sm:$0xff]
    %v68 = vld [vmem:[%s0 + $0xd0] sm:$0xff]
    %v69 = vld [vmem:[%s0 + $0xd8] sm:$0xff]
    %v70 = vld [vmem:[%s0 + $0xe0] sm:$0xff]
    %v71 = vld [vmem:[%s0 + $0xe8] sm:$0xff]
    %v72 = vld [vmem:[%s0 + $0xf0] sm:$0xff]
    %v73 = vld [vmem:[%s0 + $0xf8] sm:$0xff]
    %v74 = vld [vmem:[#allocation2] sm:$0xff]
    %v75 = vld [vmem:[#allocation2 + $0x8] sm:$0xff]
    %v76 = vld [vmem:[#allocation2 + $0x10] sm:$0xff]
    %v77 = vld [vmem:[#allocation2 + $0x18] sm:$0xff]
    %v78 = vld [vmem:[#allocation2 + $0x20] sm:$0xff]
    %v79 = vld [vmem:[#allocation2 + $0x28] sm:$0xff]
    %v80 = vld [vmem:[#allocation2 + $0x30] sm:$0xff]
    %v81 = vld [vmem:[#allocation2 + $0x38] sm:$0xff]
    %v82 = vld [vmem:[#allocation2 + $0x40] sm:$0xff]
    %v83 = vld [vmem:[#allocation2 + $0x48] sm:$0xff]
    %v84 = vld [vmem:[#allocation2 + $0x50] sm:$0xff]
    %v85 = vld [vmem:[#allocation2 + $0x58] sm:$0xff]
    %v86 = vld [vmem:[#allocation2 + $0x60] sm:$0xff]
    %v87 = vld [vmem:[#allocation2 + $0x68] sm:$0xff]
    %v88 = vld [vmem:[#allocation2 + $0x70] sm:$0xff]
    %v89 = vld [vmem:[#allocation2 + $0x78] sm:$0xff]
    %v90 = vld [vmem:[#allocation2 + $0x80] sm:$0xff]
    %v91 = vld [vmem:[#allocation2 + $0x88] sm:$0xff]
    %v92 = vld [vmem:[#allocation2 + $0x90] sm:$0xff]
    %v93 = vld [vmem:[#allocation2 + $0x98] sm:$0xff]
    %v94 = vld [vmem:[#allocation2 + $0xa0] sm:$0xff]
    %v95 = vld [vmem:[#allocation2 + $0xa8] sm:$0xff]
    %v96 = vld [vmem:[#allocation2 + $0xb0] sm:$0xff]
    %v97 = vld [vmem:[#allocation2 + $0xb8] sm:$0xff]
    %v98 = vld [vmem:[#allocation2 + $0xc0] sm:$0xff]
    %v99 = vld [vmem:[#allocation2 + $0xc8] sm:$0xff]
    %v100 = vld [vmem:[#allocation2 + $0xd0] sm:$0xff]
    %v101 = vld [vmem:[#allocation2 + $0xd8] sm:$0xff]
    %v102 = vld [vmem:[#allocation2 + $0xe0] sm:$0xff]
    %v103 = vld [vmem:[#allocation2 + $0xe8] sm:$0xff]
    %v104 = vld [vmem:[#allocation2 + $0xf0] sm:$0xff]
    %v105 = vld [vmem:[#allocation2 + $0xf8] sm:$0xff]
    %v106 = vld [vmem:[#allocation2 + $0x100] sm:$0xff]
    %v107 = vld [vmem:[#allocation2 + $0x108] sm:$0xff]
    %v108 = vld [vmem:[#allocation2 + $0x110] sm:$0xff]
    %v109 = vld [vmem:[#allocation2 + $0x118] sm:$0xff]
    %v110 = vld [vmem:[#allocation2 + $0x120] sm:$0xff]
    %v111 = vld [vmem:[#allocation2 + $0x128] sm:$0xff]
    %v112 = vld [vmem:[#allocation2 + $0x130] sm:$0xff]
    %v113 = vld [vmem:[#allocation2 + $0x138] sm:$0xff]
    %v114 = vld [vmem:[#allocation2 + $0x140] sm:$0xff]
    %v115 = vld [vmem:[#allocation2 + $0x148] sm:$0xff]
    %v116 = vld [vmem:[#allocation2 + $0x150] sm:$0xff]
    %v117 = vld [vmem:[#allocation2 + $0x158] sm:$0xff]
    %v118 = vld [vmem:[#allocation2 + $0x160] sm:$0xff]
    %v119 = vld [vmem:[#allocation2 + $0x168] sm:$0xff]
    %v120 = vld [vmem:[#allocation2 + $0x170] sm:$0xff]
    %v121 = vld [vmem:[#allocation2 + $0x178] sm:$0xff]
    %v122 = vld [vmem:[#allocation2 + $0x180] sm:$0xff]
    %v123 = vld [vmem:[#allocation2 + $0x188] sm:$0xff]
    %v124 = vld [vmem:[#allocation2 + $0x190] sm:$0xff]
    %v125 = vld [vmem:[#allocation2 + $0x198] sm:$0xff]
    %v126 = vld [vmem:[#allocation2 + $0x1a0] sm:$0xff]
    %v127 = vld [vmem:[#allocation2 + $0x1a8] sm:$0xff]
    %v128 = vld [vmem:[#allocation2 + $0x1b0] sm:$0xff]
    %v129 = vld [vmem:[#allocation2 + $0x1b8] sm:$0xff]
    %v130 = vld [vmem:[#allocation2 + $0x1c0] sm:$0xff]
    %v131 = vld [vmem:[#allocation2 + $0x1c8] sm:$0xff]
    %v132 = vld [vmem:[#allocation2 + $0x1d0] sm:$0xff]
    %v133 = vld [vmem:[#allocation2 + $0x1d8] sm:$0xff]
    %v134 = vld [vmem:[#allocation2 + $0x1e0] sm:$0xff]
    %v135 = vld [vmem:[#allocation2 + $0x1e8] sm:$0xff]
    %v136 = vld [vmem:[#allocation2 + $0x1f0] sm:$0xff]
    %v137 = vld [vmem:[#allocation2 + $0x1f8] sm:$0xff]
    %v138 = vld [vmem:[#allocation2 + $0x200] sm:$0xff]
    %v139 = vld [vmem:[#allocation2 + $0x208] sm:$0xff]
    %v140 = vld [vmem:[#allocation2 + $0x210] sm:$0xff]
    %v141 = vld [vmem:[#allocation2 + $0x218] sm:$0xff]
    %v142 = vld [vmem:[#allocation2 + $0x220] sm:$0xff]
    %v143 = vld [vmem:[#allocation2 + $0x228] sm:$0xff]
    %v144 = vld [vmem:[#allocation2 + $0x230] sm:$0xff]
    %v145 = vld [vmem:[#allocation2 + $0x238] sm:$0xff]
    %v146 = vld [vmem:[#allocation2 + $0x240] sm:$0xff]
    %v147 = vld [vmem:[#allocation2 + $0x248] sm:$0xff]
    %v148 = vld [vmem:[#allocation2 + $0x250] sm:$0xff]
    %v149 = vld [vmem:[#allocation2 + $0x258] sm:$0xff]
    %v150 = vld [vmem:[#allocation2 + $0x260] sm:$0xff]
    %v151 = vld [vmem:[#allocation2 + $0x268] sm:$0xff]
    %v152 = vld [vmem:[#allocation2 + $0x270] sm:$0xff]
    %v153 = vld [vmem:[#allocation2 + $0x278] sm:$0xff]
    %v154 = vld [vmem:[#allocation2 + $0x280] sm:$0xff]
    %v155 = vld [vmem:[#allocation2 + $0x288] sm:$0xff]
    %v156 = vld [vmem:[#allocation2 + $0x290] sm:$0xff]
    %v157 = vld [vmem:[#allocation2 + $0x298] sm:$0xff]
    %v158 = vld [vmem:[#allocation2 + $0x2a0] sm:$0xff]
    %v159 = vld [vmem:[#allocation2 + $0x2a8] sm:$0xff]
    %v160 = vld [vmem:[#allocation2 + $0x2b0] sm:$0xff]
    %v161 = vld [vmem:[#allocation2 + $0x2b8] sm:$0xff]
    %v162 = vld [vmem:[#allocation2 + $0x2c0] sm:$0xff]
    %v163 = vld [vmem:[#allocation2 + $0x2c8] sm:$0xff]
    %v164 = vld [vmem:[#allocation2 + $0x2d0] sm:$0xff]
    %v165 = vld [vmem:[#allocation2 + $0x2d8] sm:$0xff]
    %v166 = vld [vmem:[#allocation2 + $0x2e0] sm:$0xff]
    %v167 = vld [vmem:[#allocation2 + $0x2e8] sm:$0xff]
    %v168 = vld [vmem:[#allocation2 + $0x2f0] sm:$0xff]
    %v169 = vld [vmem:[#allocation2 + $0x2f8] sm:$0xff]
    %v170 = vld [vmem:[#allocation2 + $0x300] sm:$0xff]
    %v171 = vld [vmem:[#allocation2 + $0x308] sm:$0xff]
    %v172 = vld [vmem:[#allocation2 + $0x310] sm:$0xff]
    %v173 = vld [vmem:[#allocation2 + $0x318] sm:$0xff]
    %v174 = vld [vmem:[#allocation2 + $0x320] sm:$0xff]
    %v175 = vld [vmem:[#allocation2 + $0x328] sm:$0xff]
    %v176 = vld [vmem:[#allocation2 + $0x330] sm:$0xff]
    %v177 = vld [vmem:[#allocation2 + $0x338] sm:$0xff]
    %v178 = vld [vmem:[#allocation2 + $0x340] sm:$0xff]
    %v179 = vld [vmem:[#allocation2 + $0x348] sm:$0xff]
    %v180 = vld [vmem:[#allocation2 + $0x350] sm:$0xff]
    %v181 = vld [vmem:[#allocation2 + $0x358] sm:$0xff]
    %v182 = vld [vmem:[#allocation2 + $0x360] sm:$0xff]
    %v183 = vld [vmem:[#allocation2 + $0x368] sm:$0xff]
    %v184 = vld [vmem:[#allocation2 + $0x370] sm:$0xff]
    %v185 = vld [vmem:[#allocation2 + $0x378] sm:$0xff]
    %v186 = vld [vmem:[#allocation2 + $0x380] sm:$0xff]
    %v187 = vld [vmem:[#allocation2 + $0x388] sm:$0xff]
    %v188 = vld [vmem:[#allocation2 + $0x390] sm:$0xff]
    %v189 = vld [vmem:[#allocation2 + $0x398] sm:$0xff]
    %v190 = vld [vmem:[#allocation2 + $0x3a0] sm:$0xff]
    %v191 = vld [vmem:[#allocation2 + $0x3a8] sm:$0xff]
    %v192 = vld [vmem:[#allocation2 + $0x3b0] sm:$0xff]
    %v193 = vld [vmem:[#allocation2 + $0x3b8] sm:$0xff]
    %v194 = vld [vmem:[#allocation2 + $0x3c0] sm:$0xff]
    %v195 = vld [vmem:[#allocation2 + $0x3c8] sm:$0xff]
    %v196 = vld [vmem:[#allocation2 + $0x3d0] sm:$0xff]
    %v197 = vld [vmem:[#allocation2 + $0x3d8] sm:$0xff]
    %v198 = vld [vmem:[#allocation2 + $0x3e0] sm:$0xff]
    %v199 = vld [vmem:[#allocation2 + $0x3e8] sm:$0xff]
    %v200 = vld [vmem:[#allocation2 + $0x3f0] sm:$0xff]
    %v201 = vld [vmem:[#allocation2 + $0x3f8] sm:$0xff]
    %v202 = vld [vmem:[#allocation2 + $0x400] sm:$0xff]
    %v203 = vld [vmem:[#allocation2 + $0x408] sm:$0xff]
    %v204 = vld [vmem:[#allocation2 + $0x410] sm:$0xff]
    %v205 = vld [vmem:[#allocation2 + $0x418] sm:$0xff]
    %v206 = vld [vmem:[#allocation2 + $0x420] sm:$0xff]
    %v207 = vld [vmem:[#allocation2 + $0x428] sm:$0xff]
    %v208 = vld [vmem:[#allocation2 + $0x430] sm:$0xff]
    %v209 = vld [vmem:[#allocation2 + $0x438] sm:$0xff]
    %v210 = vld [vmem:[#allocation2 + $0x440] sm:$0xff]
    %v211 = vld [vmem:[#allocation2 + $0x448] sm:$0xff]
    %v212 = vld [vmem:[#allocation2 + $0x450] sm:$0xff]
    %v213 = vld [vmem:[#allocation2 + $0x458] sm:$0xff]
    %v214 = vld [vmem:[#allocation2 + $0x460] sm:$0xff]
    %v215 = vld [vmem:[#allocation2 + $0x468] sm:$0xff]
    %v216 = vld [vmem:[#allocation2 + $0x470] sm:$0xff]
    %v217 = vld [vmem:[#allocation2 + $0x478] sm:$0xff]
    %v218 = vld [vmem:[#allocation2 + $0x480] sm:$0xff]
    %v219 = vld [vmem:[#allocation2 + $0x488] sm:$0xff]
    %v220 = vld [vmem:[#allocation2 + $0x490] sm:$0xff]
    %v221 = vld [vmem:[#allocation2 + $0x498] sm:$0xff]
    %v222 = vld [vmem:[#allocation2 + $0x4a0] sm:$0xff]
    %v223 = vld [vmem:[#allocation2 + $0x4a8] sm:$0xff]
    %v224 = vld [vmem:[#allocation2 + $0x4b0] sm:$0xff]
    %v225 = vld [vmem:[#allocation2 + $0x4b8] sm:$0xff]
    %v226 = vld [vmem:[#allocation2 + $0x4c0] sm:$0xff]
    %v227 = vld [vmem:[#allocation2 + $0x4c8] sm:$0xff]
    %v228 = vld [vmem:[#allocation2 + $0x4d0] sm:$0xff]
    %v229 = vld [vmem:[#allocation2 + $0x4d8] sm:$0xff]
    %v230 = vld [vmem:[#allocation2 + $0x4e0] sm:$0xff]
    %v231 = vld [vmem:[#allocation2 + $0x4e8] sm:$0xff]
    %v232 = vld [vmem:[#allocation2 + $0x4f0] sm:$0xff]
    %v233 = vld [vmem:[#allocation2 + $0x4f8] sm:$0xff]
    %v234 = vld [vmem:[#allocation2 + $0x500] sm:$0xff]
    %v235 = vld [vmem:[#allocation2 + $0x508] sm:$0xff]
    %v236 = vld [vmem:[#allocation2 + $0x510] sm:$0xff]
    %v237 = vld [vmem:[#allocation2 + $0x518] sm:$0xff]
    %v238 = vld [vmem:[#allocation2 + $0x520] sm:$0xff]
    %v239 = vld [vmem:[#allocation2 + $0x528] sm:$0xff]
    %v240 = vld [vmem:[#allocation2 + $0x530] sm:$0xff]
    %v241 = vld [vmem:[#allocation2 + $0x538] sm:$0xff]
    %v242 = vld [vmem:[#allocation2 + $0x540] sm:$0xff]
    %v243 = vld [vmem:[#allocation2 + $0x548] sm:$0xff]
    %v244 = vld [vmem:[#allocation2 + $0x550] sm:$0xff]
    %v245 = vld [vmem:[#allocation2 + $0x558] sm:$0xff]
    %v246 = vld [vmem:[#allocation2 + $0x560] sm:$0xff]
    %v247 = vld [vmem:[#allocation2 + $0x568] sm:$0xff]
    %v248 = vld [vmem:[#allocation2 + $0x570] sm:$0xff]
    %v249 = vld [vmem:[#allocation2 + $0x578] sm:$0xff]
    %v250 = vld [vmem:[#allocation2 + $0x580] sm:$0xff]
    %v251 = vld [vmem:[#allocation2 + $0x588] sm:$0xff]
    %v252 = vld [vmem:[#allocation2 + $0x590] sm:$0xff]
    %v253 = vld [vmem:[#allocation2 + $0x598] sm:$0xff]
    %v254 = vld [vmem:[#allocation2 + $0x5a0] sm:$0xff]
    %v255 = vld [vmem:[#allocation2 + $0x5a8] sm:$0xff]
    %v256 = vld [vmem:[#allocation2 + $0x5b0] sm:$0xff]
    %v257 = vld [vmem:[#allocation2 + $0x5b8] sm:$0xff]
    %v258 = vld [vmem:[#allocation2 + $0x5c0] sm:$0xff]
    %v259 = vld [vmem:[#allocation2 + $0x5c8] sm:$0xff]
    %v260 = vld [vmem:[#allocation2 + $0x5d0] sm:$0xff]
    %v261 = vld [vmem:[#allocation2 + $0x5d8] sm:$0xff]
    %v262 = vld [vmem:[#allocation2 + $0x5e0] sm:$0xff]
    %v263 = vld [vmem:[#allocation2 + $0x5e8] sm:$0xff]
    %v264 = vld [vmem:[#allocation2 + $0x5f0] sm:$0xff]
    %v265 = vld [vmem:[#allocation2 + $0x5f8] sm:$0xff]
    %266 = vmatprep.subr.mxu0 %v75
    %267 = vmatpush1.msra.mxu0 %v74
    %268 = vmatprep.subr.mxu0 %v81
    %269 = vmatpush1.msra.mxu0 %v80
    %270 = vmatprep.subr.mxu0 %v87
    %271 = vmatpush1.msra.mxu0 %v86
    %272 = vmatprep.subr.mxu0 %v93
    %273 = vmatpush1.msra.mxu0 %v92
    %274 = vmatprep.subr.mxu0 %v99
    %275 = vmatpush1.msra.mxu0 %v98
    %276 = vmatprep.subr.mxu0 %v105
    %277 = vmatpush1.msra.mxu0 %v104
    %278 = vmatprep.subr.mxu0 %v111
    %279 = vmatpush1.msra.mxu0 %v110
    %280 = vmatprep.subr.mxu0 %v117
    %281 = vmatpush1.msra.mxu0 %v116
    %282 = vmatprep.subr.mxu0 %v123
    %283 = vmatpush1.msra.mxu0 %v122
    %284 = vmatprep.subr.mxu0 %v129
    %285 = vmatpush1.msra.mxu0 %v128
    %286 = vmatprep.subr.mxu0 %v135
    %287 = vmatpush1.msra.mxu0 %v134
    %288 = vmatprep.subr.mxu0 %v141
    %289 = vmatpush1.msra.mxu0 %v140
    %290 = vmatprep.subr.mxu0 %v147
    %291 = vmatpush1.msra.mxu0 %v146
    %292 = vmatprep.subr.mxu0 %v153
    %293 = vmatpush1.msra.mxu0 %v152
    %294 = vmatprep.subr.mxu0 %v159
    %295 = vmatpush1.msra.mxu0 %v158
    %296 = vmatprep.subr.mxu0 %v165
    %297 = vmatpush1.msra.mxu0 %v164
    %298 = vmatprep.subr.mxu0 %v171
    %299 = vmatpush1.msra.mxu0 %v170
    %300 = vmatprep.subr.mxu0 %v177
    %301 = vmatpush1.msra.mxu0 %v176
    %302 = vmatprep.subr.mxu0 %v183
    %303 = vmatpush1.msra.mxu0 %v182
    %304 = vmatprep.subr.mxu0 %v189
    %305 = vmatpush1.msra.mxu0 %v188
    %306 = vmatprep.subr.mxu0 %v195
    %307 = vmatpush1.msra.mxu0 %v194
    %308 = vmatprep.subr.mxu0 %v201
    %309 = vmatpush1.msra.mxu0 %v200
    %310 = vmatprep.subr.mxu0 %v207
    %311 = vmatpush1.msra.mxu0 %v206
    %312 = vmatprep.subr.mxu0 %v213
    %313 = vmatpush1.msra.mxu0 %v212
    %314 = vmatprep.subr.mxu0 %v219
    %315 = vmatpush1.msra.mxu0 %v218
    %316 = vmatprep.subr.mxu0 %v225
    %317 = vmatpush1.msra.mxu0 %v224
    %318 = vmatprep.subr.mxu0 %v231
    %319 = vmatpush1.msra.mxu0 %v230
    %320 = vmatprep.subr.mxu0 %v237
    %321 = vmatpush1.msra.mxu0 %v236
    %322 = vmatprep.subr.mxu0 %v243
    %323 = vmatpush1.msra.mxu0 %v242
    %324 = vmatprep.subr.mxu0 %v249
    %325 = vmatpush1.msra.mxu0 %v248
    %326 = vmatprep.subr.mxu0 %v255
    %327 = vmatpush1.msra.mxu0 %v254
    %328 = vmatprep.subr.mxu0 %v261
    %329 = vmatpush1.msra.mxu0 %v260
    %330 = vmatprep.mubr.f32.mxu0 %v43
    %331 = vmatmul.mubr.f32.gmra.mrb[0].mxu0 %v42
    %v332 = vpop.f32.mrb[0].mxu0
    %v333 = vadd.f32 0.0, %v332
    %v334 = vpop.f32.mrb[0].mxu0
    %v335 = vadd.f32 0.0, %v334
    %336 = vmatprep.mubr.f32.mxu0 %v45
    %337 = vmatmul.mubr.f32.gmra.mrb[0].mxu0 %v44
    %v338 = vpop.f32.mrb[0].mxu0
    %v339 = vadd.f32 0.0, %v338
    %v340 = vpop.f32.mrb[0].mxu0
    %v341 = vadd.f32 0.0, %v340
    %342 = vmatprep.mubr.f32.mxu0 %v47
    %343 = vmatmul.mubr.f32.gmra.mrb[0].mxu0 %v46
    %v344 = vpop.f32.mrb[0].mxu0
    %v345 = vadd.f32 0.0, %v344
    %v346 = vpop.f32.mrb[0].mxu0
    %v347 = vadd.f32 0.0, %v346
    %348 = vmatprep.mubr.f32.mxu0 %v49
    %349 = vmatmul.mubr.f32.gmra.mrb[0].mxu0 %v48
    %v350 = vpop.f32.mrb[0].mxu0
    %v351 = vadd.f32 0.0, %v350
    %v352 = vpop.f32.mrb[0].mxu0
    %v353 = vadd.f32 0.0, %v352
    %354 = vmatprep.mubr.f32.mxu0 %v51
    %355 = vmatmul.mubr.f32.gmra.mrb[0].mxu0 %v50
    %v356 = vpop.f32.mrb[0].mxu0
    %v357 = vadd.f32 0.0, %v356
    %v358 = vpop.f32.mrb[0].mxu0
    %v359 = vadd.f32 0.0, %v358
    %360 = vmatprep.mubr.f32.mxu0 %v53
    %361 = vmatmul.mubr.f32.gmra.mrb[0].mxu0 %v52
    %v362 = vpop.f32.mrb[0].mxu0
    %v363 = vadd.f32 0.0, %v362
    %v364 = vpop.f32.mrb[0].mxu0
    %v365 = vadd.f32 0.0, %v364
    %366 = vmatprep.mubr.f32.mxu0 %v55
    %367 = vmatmul.mubr.f32.gmra.mrb[0].mxu0 %v54
    %v368 = vpop.f32.mrb[0].mxu0
    %v369 = vadd.f32 0.0, %v368
    %v370 = vpop.f32.mrb[0].mxu0
    %v371 = vadd.f32 0.0, %v370
    %372 = vmatprep.mubr.f32.mxu0 %v57
    %373 = vmatmul.mubr.f32.gmra.mrb[0].mxu0 %v56
    %v374 = vpop.f32.mrb[0].mxu0
    %v375 = vadd.f32 0.0, %v374
    %v376 = vpop.f32.mrb[0].mxu0
    %v377 = vadd.f32 0.0, %v376
    %378 = vmatprep.mubr.f32.mxu0 %v59
    %379 = vmatmul.mubr.f32.gmra.mrb[0].mxu0 %v58
    %v380 = vpop.f32.mrb[0].mxu0
    %v381 = vadd.f32 0.0, %v380
    %v382 = vpop.f32.mrb[0].mxu0
    %v383 = vadd.f32 0.0, %v382
    %384 = vmatprep.mubr.f32.mxu0 %v61
    %385 = vmatmul.mubr.f32.gmra.mrb[0].mxu0 %v60
    %v386 = vpop.f32.mrb[0].mxu0
    %v387 = vadd.f32 0.0, %v386
    %v388 = vpop.f32.mrb[0].mxu0
    %v389 = vadd.f32 0.0, %v388
    %390 = vmatprep.mubr.f32.mxu0 %v63
    %391 = vmatmul.mubr.f32.gmra.mrb[0].mxu0 %v62
    %v392 = vpop.f32.mrb[0].mxu0
    %v393 = vadd.f32 0.0, %v392
    %v394 = vpop.f32.mrb[0].mxu0
    %v395 = vadd.f32 0.0, %v394
    %396 = vmatprep.mubr.f32.mxu0 %v65
    %397 = vmatmul.mubr.f32.gmra.mrb[0].mxu0 %v64
    %v398 = vpop.f32.mrb[0].mxu0
    %v399 = vadd.f32 0.0, %v398
    %v400 = vpop.f32.mrb[0].mxu0
    %v401 = vadd.f32 0.0, %v400
    %402 = vmatprep.mubr.f32.mxu0 %v67
    %403 = vmatmul.mubr.f32.gmra.mrb[0].mxu0 %v66
    %v404 = vpop.f32.mrb[0].mxu0
    %v405 = vadd.f32 0.0, %v404
    %v406 = vpop.f32.mrb[0].mxu0
    %v407 = vadd.f32 0.0, %v406
    %408 = vmatprep.mubr.f32.mxu0 %v69
    %409 = vmatmul.mubr.f32.gmra.mrb[0].mxu0 %v68
    %v410 = vpop.f32.mrb[0].mxu0
    %v411 = vadd.f32 0.0, %v410
    %v412 = vpop.f32.mrb[0].mxu0
    %v413 = vadd.f32 0.0, %v412
    %414 = vmatprep.mubr.f32.mxu0 %v71
    %415 = vmatmul.mubr.f32.gmra.mrb[0].mxu0 %v70
    %v416 = vpop.f32.mrb[0].mxu0
    %v417 = vadd.f32 0.0, %v416
    %v418 = vpop.f32.mrb[0].mxu0
    %v419 = vadd.f32 0.0, %v418
    %420 = vmatprep.mubr.f32.mxu0 %v73
    %421 = vmatmul.mubr.f32.gmra.mrb[0].mxu0 %v72
    %v422 = vpop.f32.mrb[0].mxu0
    %v423 = vadd.f32 0.0, %v422
    %v424 = vpop.f32.mrb[0].mxu0
    %v425 = vadd.f32 0.0, %v424
    %426 = vdwg.mxu0
    %427 = vmatprep.subr.mxu0 %v77
    %428 = vmatpush1.msra.mxu0 %v76
    %429 = vmatprep.subr.mxu0 %v83
    %430 = vmatpush1.msra.mxu0 %v82
    %431 = vmatprep.subr.mxu0 %v89
    %432 = vmatpush1.msra.mxu0 %v88
    %433 = vmatprep.subr.mxu0 %v95
    %434 = vmatpush1.msra.mxu0 %v94
    %435 = vmatprep.subr.mxu0 %v101
    %436 = vmatpush1.msra.mxu0 %v100
    %437 = vmatprep.subr.mxu0 %v107
    %438 = vmatpush1.msra.mxu0 %v106
    %439 = vmatprep.subr.mxu0 %v113
    %440 = vmatpush1.msra.mxu0 %v112
    %441 = vmatprep.subr.mxu0 %v119
    %442 = vmatpush1.msra.mxu0 %v118
    %443 = vmatprep.subr.mxu0 %v125
    %444 = vmatpush1.msra.mxu0 %v124
    %445 = vmatprep.subr.mxu0 %v131
    %446 = vmatpush1.msra.mxu0 %v130
    %447 = vmatprep.subr.mxu0 %v137
    %448 = vmatpush1.msra.mxu0 %v136
    %449 = vmatprep.subr.mxu0 %v143
    %450 = vmatpush1.msra.mxu0 %v142
    %451 = vmatprep.subr.mxu0 %v149
    %452 = vmatpush1.msra.mxu0 %v148
    %453 = vmatprep.subr.mxu0 %v155
    %454 = vmatpush1.msra.mxu0 %v154
    %455 = vmatprep.subr.mxu0 %v161
    %456 = vmatpush1.msra.mxu0 %v160
    %457 = vmatprep.subr.mxu0 %v167
    %458 = vmatpush1.msra.mxu0 %v166
    %459 = vmatprep.subr.mxu0 %v173
    %460 = vmatpush1.msra.mxu0 %v172
    %461 = vmatprep.subr.mxu0 %v179
    %462 = vmatpush1.msra.mxu0 %v178
    %463 = vmatprep.subr.mxu0 %v185
    %464 = vmatpush1.msra.mxu0 %v184
    %465 = vmatprep.subr.mxu0 %v191
    %466 = vmatpush1.msra.mxu0 %v190
    %467 = vmatprep.subr.mxu0 %v197
    %468 = vmatpush1.msra.mxu0 %v196
    %469 = vmatprep.subr.mxu0 %v203
    %470 = vmatpush1.msra.mxu0 %v202
    %471 = vmatprep.subr.mxu0 %v209
    %472 = vmatpush1.msra.mxu0 %v208
    %473 = vmatprep.subr.mxu0 %v215
    %474 = vmatpush1.msra.mxu0 %v214
    %475 = vmatprep.subr.mxu0 %v221
    %476 = vmatpush1.msra.mxu0 %v220
    %477 = vmatprep.subr.mxu0 %v227
    %478 = vmatpush1.msra.mxu0 %v226
    %479 = vmatprep.subr.mxu0 %v233
    %480 = vmatpush1.msra.mxu0 %v232
    %481 = vmatprep.subr.mxu0 %v239
    %482 = vmatpush1.msra.mxu0 %v238
    %483 = vmatprep.subr.mxu0 %v245
    %484 = vmatpush1.msra.mxu0 %v244
    %485 = vmatprep.subr.mxu0 %v251
    %486 = vmatpush1.msra.mxu0 %v250
    %487 = vmatprep.subr.mxu0 %v257
    %488 = vmatpush1.msra.mxu0 %v256
    %489 = vmatprep.subr.mxu0 %v263
    %490 = vmatpush1.msra.mxu0 %v262
    %491 = vmatprep.mubr.f32.mxu0 %v43
    %492 = vmatmul.mubr.f32.gmra.mrb[0].mxu0 %v42
    %v493 = vpop.f32.mrb[0].mxu0
    %v494 = vadd.f32 0.0, %v493
    %v495 = vpop.f32.mrb[0].mxu0
    %v496 = vadd.f32 0.0, %v495
    %497 = vmatprep.mubr.f32.mxu0 %v45
    %498 = vmatmul.mubr.f32.gmra.mrb[0].mxu0 %v44
    %v499 = vpop.f32.mrb[0].mxu0
    %v500 = vadd.f32 0.0, %v499
    %v501 = vpop.f32.mrb[0].mxu0
    %v502 = vadd.f32 0.0, %v501
    %503 = vmatprep.mubr.f32.mxu0 %v47
    %504 = vmatmul.mubr.f32.gmra.mrb[0].mxu0 %v46
    %v505 = vpop.f32.mrb[0].mxu0
    %v506 = vadd.f32 0.0, %v505
    %v507 = vpop.f32.mrb[0].mxu0
    %v508 = vadd.f32 0.0, %v507
    %509 = vmatprep.mubr.f32.mxu0 %v49
    %510 = vmatmul.mubr.f32.gmra.mrb[0].mxu0 %v48
    %v511 = vpop.f32.mrb[0].mxu0
    %v512 = vadd.f32 0.0, %v511
    %v513 = vpop.f32.mrb[0].mxu0
    %v514 = vadd.f32 0.0, %v513
    %515 = vmatprep.mubr.f32.mxu0 %v51
    %516 = vmatmul.mubr.f32.gmra.mrb[0].mxu0 %v50
    %v517 = vpop.f32.mrb[0].mxu0
    %v518 = vadd.f32 0.0, %v517
    %v519 = vpop.f32.mrb[0].mxu0
    %v520 = vadd.f32 0.0, %v519
    %521 = vmatprep.mubr.f32.mxu0 %v53
    %522 = vmatmul.mubr.f32.gmra.mrb[0].mxu0 %v52
    %v523 = vpop.f32.mrb[0].mxu0
    %v524 = vadd.f32 0.0, %v523
    %v525 = vpop.f32.mrb[0].mxu0
    %v526 = vadd.f32 0.0, %v525
    %527 = vmatprep.mubr.f32.mxu0 %v55
    %528 = vmatmul.mubr.f32.gmra.mrb[0].mxu0 %v54
    %v529 = vpop.f32.mrb[0].mxu0
    %v530 = vadd.f32 0.0, %v529
    %v531 = vpop.f32.mrb[0].mxu0
    %v532 = vadd.f32 0.0, %v531
    %533 = vmatprep.mubr.f32.mxu0 %v57
    %534 = vmatmul.mubr.f32.gmra.mrb[0].mxu0 %v56
    %v535 = vpop.f32.mrb[0].mxu0
    %v536 = vadd.f32 0.0, %v535
    %v537 = vpop.f32.mrb[0].mxu0
    %v538 = vadd.f32 0.0, %v537
    %539 = vmatprep.mubr.f32.mxu0 %v59
    %540 = vmatmul.mubr.f32.gmra.mrb[0].mxu0 %v58
    %v541 = vpop.f32.mrb[0].mxu0
    %v542 = vadd.f32 0.0, %v541
    %v543 = vpop.f32.mrb[0].mxu0
    %v544 = vadd.f32 0.0, %v543
    %545 = vmatprep.mubr.f32.mxu0 %v61
    %546 = vmatmul.mubr.f32.gmra.mrb[0].mxu0 %v60
    %v547 = vpop.f32.mrb[0].mxu0
    %v548 = vadd.f32 0.0, %v547
    %v549 = vpop.f32.mrb[0].mxu0
    %v550 = vadd.f32 0.0, %v549
    %551 = vmatprep.mubr.f32.mxu0 %v63
    %552 = vmatmul.mubr.f32.gmra.mrb[0].mxu0 %v62
    %v553 = vpop.f32.mrb[0].mxu0
    %v554 = vadd.f32 0.0, %v553
    %v555 = vpop.f32.mrb[0].mxu0
    %v556 = vadd.f32 0.0, %v555
    %557 = vmatprep.mubr.f32.mxu0 %v65
    %558 = vmatmul.mubr.f32.gmra.mrb[0].mxu0 %v64
    %v559 = vpop.f32.mrb[0].mxu0
    %v560 = vadd.f32 0.0, %v559
    %v561 = vpop.f32.mrb[0].mxu0
    %v562 = vadd.f32 0.0, %v561
    %563 = vmatprep.mubr.f32.mxu0 %v67
    %564 = vmatmul.mubr.f32.gmra.mrb[0].mxu0 %v66
    %v565 = vpop.f32.mrb[0].mxu0
    %v566 = vadd.f32 0.0, %v565
    %v567 = vpop.f32.mrb[0].mxu0
    %v568 = vadd.f32 0.0, %v567
    %569 = vmatprep.mubr.f32.mxu0 %v69
    %570 = vmatmul.mubr.f32.gmra.mrb[0].mxu0 %v68
    %v571 = vpop.f32.mrb[0].mxu0
    %v572 = vadd.f32 0.0, %v571
    %v573 = vpop.f32.mrb[0].mxu0
    %v574 = vadd.f32 0.0, %v573
    %575 = vmatprep.mubr.f32.mxu0 %v71
    %576 = vmatmul.mubr.f32.gmra.mrb[0].mxu0 %v70
    %v577 = vpop.f32.mrb[0].mxu0
    %v578 = vadd.f32 0.0, %v577
    %v579 = vpop.f32.mrb[0].mxu0
    %v580 = vadd.f32 0.0, %v579
    %581 = vmatprep.mubr.f32.mxu0 %v73
    %582 = vmatmul.mubr.f32.gmra.mrb[0].mxu0 %v72
    %v583 = vpop.f32.mrb[0].mxu0
    %v584 = vadd.f32 0.0, %v583
    %v585 = vpop.f32.mrb[0].mxu0
    %v586 = vadd.f32 0.0, %v585
    %587 = vdwg.mxu0
    %588 = vmatprep.subr.mxu0 %v79
    %589 = vmatpush1.msra.mxu0 %v78
    %590 = vmatprep.subr.mxu0 %v85
    %591 = vmatpush1.msra.mxu0 %v84
    %592 = vmatprep.subr.mxu0 %v91
    %593 = vmatpush1.msra.mxu0 %v90
    %594 = vmatprep.subr.mxu0 %v97
    %595 = vmatpush1.msra.mxu0 %v96
    %596 = vmatprep.subr.mxu0 %v103
    %597 = vmatpush1.msra.mxu0 %v102
    %598 = vmatprep.subr.mxu0 %v109
    %599 = vmatpush1.msra.mxu0 %v108
    %600 = vmatprep.subr.mxu0 %v115
    %601 = vmatpush1.msra.mxu0 %v114
    %602 = vmatprep.subr.mxu0 %v121
    %603 = vmatpush1.msra.mxu0 %v120
    %604 = vmatprep.subr.mxu0 %v127
    %605 = vmatpush1.msra.mxu0 %v126
    %606 = vmatprep.subr.mxu0 %v133
    %607 = vmatpush1.msra.mxu0 %v132
    %608 = vmatprep.subr.mxu0 %v139
    %609 = vmatpush1.msra.mxu0 %v138
    %610 = vmatprep.subr.mxu0 %v145
    %611 = vmatpush1.msra.mxu0 %v144
    %612 = vmatprep.subr.mxu0 %v151
    %613 = vmatpush1.msra.mxu0 %v150
    %614 = vmatprep.subr.mxu0 %v157
    %615 = vmatpush1.msra.mxu0 %v156
    %616 = vmatprep.subr.mxu0 %v163
    %617 = vmatpush1.msra.mxu0 %v162
    %618 = vmatprep.subr.mxu0 %v169
    %619 = vmatpush1.msra.mxu0 %v168
    %620 = vmatprep.subr.mxu0 %v175
    %621 = vmatpush1.msra.mxu0 %v174
    %622 = vmatprep.subr.mxu0 %v181
    %623 = vmatpush1.msra.mxu0 %v180
    %624 = vmatprep.subr.mxu0 %v187
    %625 = vmatpush1.msra.mxu0 %v186
    %626 = vmatprep.subr.mxu0 %v193
    %627 = vmatpush1.msra.mxu0 %v192
    %628 = vmatprep.subr.mxu0 %v199
    %629 = vmatpush1.msra.mxu0 %v198
    %630 = vmatprep.subr.mxu0 %v205
    %631 = vmatpush1.msra.mxu0 %v204
    %632 = vmatprep.subr.mxu0 %v211
    %633 = vmatpush1.msra.mxu0 %v210
    %634 = vmatprep.subr.mxu0 %v217
    %635 = vmatpush1.msra.mxu0 %v216
    %636 = vmatprep.subr.mxu0 %v223
    %637 = vmatpush1.msra.mxu0 %v222
    %638 = vmatprep.subr.mxu0 %v229
    %639 = vmatpush1.msra.mxu0 %v228
    %640 = vmatprep.subr.mxu0 %v235
    %641 = vmatpush1.msra.mxu0 %v234
    %642 = vmatprep.subr.mxu0 %v241
    %643 = vmatpush1.msra.mxu0 %v240
    %644 = vmatprep.subr.mxu0 %v247
    %645 = vmatpush1.msra.mxu0 %v246
    %646 = vmatprep.subr.mxu0 %v253
    %647 = vmatpush1.msra.mxu0 %v252
    %648 = vmatprep.subr.mxu0 %v259
    %649 = vmatpush1.msra.mxu0 %v258
    %650 = vmatprep.subr.mxu0 %v265
    %651 = vmatpush1.msra.mxu0 %v264
    %652 = vmatprep.mubr.f32.mxu0 %v43
    %653 = vmatmul.mubr.f32.gmra.mrb[0].mxu0 %v42
    %v654 = vpop.f32.mrb[0].mxu0
    %v655 = vadd.f32 0.0, %v654
    %v656 = vpop.f32.mrb[0].mxu0
    %v657 = vadd.f32 0.0, %v656
    %658 = vmatprep.mubr.f32.mxu0 %v45
    %659 = vmatmul.mubr.f32.gmra.mrb[0].mxu0 %v44
    %v660 = vpop.f32.mrb[0].mxu0
    %v661 = vadd.f32 0.0, %v660
    %v662 = vpop.f32.mrb[0].mxu0
    %v663 = vadd.f32 0.0, %v662
    %664 = vmatprep.mubr.f32.mxu0 %v47
    %665 = vmatmul.mubr.f32.gmra.mrb[0].mxu0 %v46
    %v666 = vpop.f32.mrb[0].mxu0
    %v667 = vadd.f32 0.0, %v666
    %v668 = vpop.f32.mrb[0].mxu0
    %v669 = vadd.f32 0.0, %v668
    %670 = vmatprep.mubr.f32.mxu0 %v49
    %671 = vmatmul.mubr.f32.gmra.mrb[0].mxu0 %v48
    %v672 = vpop.f32.mrb[0].mxu0
    %v673 = vadd.f32 0.0, %v672
    %v674 = vpop.f32.mrb[0].mxu0
    %v675 = vadd.f32 0.0, %v674
    %676 = vmatprep.mubr.f32.mxu0 %v51
    %677 = vmatmul.mubr.f32.gmra.mrb[0].mxu0 %v50
    %v678 = vpop.f32.mrb[0].mxu0
    %v679 = vadd.f32 0.0, %v678
    %v680 = vpop.f32.mrb[0].mxu0
    %v681 = vadd.f32 0.0, %v680
    %682 = vmatprep.mubr.f32.mxu0 %v53
    %683 = vmatmul.mubr.f32.gmra.mrb[0].mxu0 %v52
    %v684 = vpop.f32.mrb[0].mxu0
    %v685 = vadd.f32 0.0, %v684
    %v686 = vpop.f32.mrb[0].mxu0
    %v687 = vadd.f32 0.0, %v686
    %688 = vmatprep.mubr.f32.mxu0 %v55
    %689 = vmatmul.mubr.f32.gmra.mrb[0].mxu0 %v54
    %v690 = vpop.f32.mrb[0].mxu0
    %v691 = vadd.f32 0.0, %v690
    %v692 = vpop.f32.mrb[0].mxu0
    %v693 = vadd.f32 0.0, %v692
    %694 = vmatprep.mubr.f32.mxu0 %v57
    %695 = vmatmul.mubr.f32.gmra.mrb[0].mxu0 %v56
    %v696 = vpop.f32.mrb[0].mxu0
    %v697 = vadd.f32 0.0, %v696
    %v698 = vpop.f32.mrb[0].mxu0
    %v699 = vadd.f32 0.0, %v698
    %700 = vmatprep.mubr.f32.mxu0 %v59
    %701 = vmatmul.mubr.f32.gmra.mrb[0].mxu0 %v58
    %v702 = vpop.f32.mrb[0].mxu0
    %v703 = vadd.f32 0.0, %v702
    %v704 = vpop.f32.mrb[0].mxu0
    %v705 = vadd.f32 0.0, %v704
    %706 = vmatprep.mubr.f32.mxu0 %v61
    %707 = vmatmul.mubr.f32.gmra.mrb[0].mxu0 %v60
    %v708 = vpop.f32.mrb[0].mxu0
    %v709 = vadd.f32 0.0, %v708
    %v710 = vpop.f32.mrb[0].mxu0
    %v711 = vadd.f32 0.0, %v710
    %712 = vmatprep.mubr.f32.mxu0 %v63
    %713 = vmatmul.mubr.f32.gmra.mrb[0].mxu0 %v62
    %v714 = vpop.f32.mrb[0].mxu0
    %v715 = vadd.f32 0.0, %v714
    %v716 = vpop.f32.mrb[0].mxu0
    %v717 = vadd.f32 0.0, %v716
    %718 = vmatprep.mubr.f32.mxu0 %v65
    %719 = vmatmul.mubr.f32.gmra.mrb[0].mxu0 %v64
    %v720 = vpop.f32.mrb[0].mxu0
    %v721 = vadd.f32 0.0, %v720
    %v722 = vpop.f32.mrb[0].mxu0
    %v723 = vadd.f32 0.0, %v722
    %724 = vmatprep.mubr.f32.mxu0 %v67
    %725 = vmatmul.mubr.f32.gmra.mrb[0].mxu0 %v66
    %v726 = vpop.f32.mrb[0].mxu0
    %v727 = vadd.f32 0.0, %v726
    %v728 = vpop.f32.mrb[0].mxu0
    %v729 = vadd.f32 0.0, %v728
    %730 = vmatprep.mubr.f32.mxu0 %v69
    %731 = vmatmul.mubr.f32.gmra.mrb[0].mxu0 %v68
    %v732 = vpop.f32.mrb[0].mxu0
    %v733 = vadd.f32 0.0, %v732
    %v734 = vpop.f32.mrb[0].mxu0
    %v735 = vadd.f32 0.0, %v734
    %736 = vmatprep.mubr.f32.mxu0 %v71
    %737 = vmatmul.mubr.f32.gmra.mrb[0].mxu0 %v70
    %v738 = vpop.f32.mrb[0].mxu0
    %v739 = vadd.f32 0.0, %v738
    %v740 = vpop.f32.mrb[0].mxu0
    %v741 = vadd.f32 0.0, %v740
    %742 = vmatprep.mubr.f32.mxu0 %v73
    %743 = vmatmul.mubr.f32.gmra.mrb[0].mxu0 %v72
    %v744 = vpop.f32.mrb[0].mxu0
    %v745 = vadd.f32 0.0, %v744
    %v746 = vpop.f32.mrb[0].mxu0
    %v747 = vadd.f32 0.0, %v746
    %748 = vdwg.mxu0
    %v749 = vmax.f32 %v333, 0.0
    %v750 = vmax.f32 %v335, 0.0
    %v751 = vmax.f32 %v494, 0.0
    %v752 = vmax.f32 %v339, 0.0
    %v753 = vmax.f32 %v341, 0.0
    %v754 = vmax.f32 %v500, 0.0
    %v755 = vmax.f32 %v345, 0.0
    %v756 = vmax.f32 %v347, 0.0
    %v757 = vmax.f32 %v506, 0.0
    %v758 = vmax.f32 %v351, 0.0
    %v759 = vmax.f32 %v353, 0.0
    %v760 = vmax.f32 %v512, 0.0
    %v761 = vmax.f32 %v357, 0.0
    %v762 = vmax.f32 %v359, 0.0
    %v763 = vmax.f32 %v518, 0.0
    %v764 = vmax.f32 %v363, 0.0
    %v765 = vmax.f32 %v365, 0.0
    %v766 = vmax.f32 %v524, 0.0
    %v767 = vmax.f32 %v369, 0.0
    %v768 = vmax.f32 %v371, 0.0
    %v769 = vmax.f32 %v530, 0.0
    %v770 = vmax.f32 %v375, 0.0
    %v771 = vmax.f32 %v377, 0.0
    %v772 = vmax.f32 %v536, 0.0
    %v773 = vmax.f32 %v381, 0.0
    %v774 = vmax.f32 %v383, 0.0
    %v775 = vmax.f32 %v542, 0.0
    %v776 = vmax.f32 %v387, 0.0
    %v777 = vmax.f32 %v389, 0.0
    %v778 = vmax.f32 %v548, 0.0
    %v779 = vmax.f32 %v393, 0.0
    %v780 = vmax.f32 %v395, 0.0
    %v781 = vmax.f32 %v554, 0.0
    %v782 = vmax.f32 %v399, 0.0
    %v783 = vmax.f32 %v401, 0.0
    %v784 = vmax.f32 %v560, 0.0
    %v785 = vmax.f32 %v405, 0.0
    %v786 = vmax.f32 %v407, 0.0
    %v787 = vmax.f32 %v566, 0.0
    %v788 = vmax.f32 %v411, 0.0
    %v789 = vmax.f32 %v413, 0.0
    %v790 = vmax.f32 %v572, 0.0
    %v791 = vmax.f32 %v417, 0.0
    %v792 = vmax.f32 %v419, 0.0
    %v793 = vmax.f32 %v578, 0.0
    %v794 = vmax.f32 %v423, 0.0
    %v795 = vmax.f32 %v425, 0.0
    %v796 = vmax.f32 %v584, 0.0
    %v797 = vmul.f32 %v749, %v496
    %v798 = vmul.f32 %v750, %v655
    %v799 = vmul.f32 %v751, %v657
    %v800 = vmul.f32 %v752, %v502
    %v801 = vmul.f32 %v753, %v661
    %v802 = vmul.f32 %v754, %v663
    %v803 = vmul.f32 %v755, %v508
    %v804 = vmul.f32 %v756, %v667
    %v805 = vmul.f32 %v757, %v669
    %v806 = vmul.f32 %v758, %v514
    %v807 = vmul.f32 %v759, %v673
    %v808 = vmul.f32 %v760, %v675
    %v809 = vmul.f32 %v761, %v520
    %v810 = vmul.f32 %v762, %v679
    %v811 = vmul.f32 %v763, %v681
    %v812 = vmul.f32 %v764, %v526
    %v813 = vmul.f32 %v765, %v685
    %v814 = vmul.f32 %v766, %v687
    %v815 = vmul.f32 %v767, %v532
    %v816 = vmul.f32 %v768, %v691
    %v817 = vmul.f32 %v769, %v693
    %v818 = vmul.f32 %v770, %v538
    %v819 = vmul.f32 %v771, %v697
    %v820 = vmul.f32 %v772, %v699
    %v821 = vmul.f32 %v773, %v544
    %v822 = vmul.f32 %v774, %v703
    %v823 = vmul.f32 %v775, %v705
    %v824 = vmul.f32 %v776, %v550
    %v825 = vmul.f32 %v777, %v709
    %v826 = vmul.f32 %v778, %v711
    %v827 = vmul.f32 %v779, %v556
    %v828 = vmul.f32 %v780, %v715
    %v829 = vmul.f32 %v781, %v717
    %v830 = vmul.f32 %v782, %v562
    %v831 = vmul.f32 %v783, %v721
    %v832 = vmul.f32 %v784, %v723
    %v833 = vmul.f32 %v785, %v568
    %v834 = vmul.f32 %v786, %v727
    %v835 = vmul.f32 %v787, %v729
    %v836 = vmul.f32 %v788, %v574
    %v837 = vmul.f32 %v789, %v733
    %v838 = vmul.f32 %v790, %v735
    %v839 = vmul.f32 %v791, %v580
    %v840 = vmul.f32 %v792, %v739
    %v841 = vmul.f32 %v793, %v741
    %v842 = vmul.f32 %v794, %v586
    %v843 = vmul.f32 %v795, %v745
    %v844 = vmul.f32 %v796, %v747
    %v845 = vld [vmem:[#allocation4] sm:$0xff]
    %v846 = vld [vmem:[#allocation4 + $0x8] sm:$0xff]
    %v847 = vld [vmem:[#allocation4 + $0x10] sm:$0xff]
    %v848 = vld [vmem:[#allocation4 + $0x18] sm:$0xff]
    %v849 = vld [vmem:[#allocation4 + $0x20] sm:$0xff]
    %v850 = vld [vmem:[#allocation4 + $0x28] sm:$0xff]
    %v851 = vld [vmem:[#allocation4 + $0x30] sm:$0xff]
    %v852 = vld [vmem:[#allocation4 + $0x38] sm:$0xff]
    %v853 = vld [vmem:[#allocation4 + $0x40] sm:$0xff]
    %v854 = vld [vmem:[#allocation4 + $0x48] sm:$0xff]
    %v855 = vld [vmem:[#allocation4 + $0x50] sm:$0xff]
    %v856 = vld [vmem:[#allocation4 + $0x58] sm:$0xff]
    %v857 = vld [vmem:[#allocation4 + $0x60] sm:$0xff]
    %v858 = vld [vmem:[#allocation4 + $0x68] sm:$0xff]
    %v859 = vld [vmem:[#allocation4 + $0x70] sm:$0xff]
    %v860 = vld [vmem:[#allocation4 + $0x78] sm:$0xff]
    %v861 = vld [vmem:[#allocation4 + $0x80] sm:$0xff]
    %v862 = vld [vmem:[#allocation4 + $0x88] sm:$0xff]
    %v863 = vld [vmem:[#allocation4 + $0x90] sm:$0xff]
    %v864 = vld [vmem:[#allocation4 + $0x98] sm:$0xff]
    %v865 = vld [vmem:[#allocation4 + $0xa0] sm:$0xff]
    %v866 = vld [vmem:[#allocation4 + $0xa8] sm:$0xff]
    %v867 = vld [vmem:[#allocation4 + $0xb0] sm:$0xff]
    %v868 = vld [vmem:[#allocation4 + $0xb8] sm:$0xff]
    %v869 = vld [vmem:[#allocation4 + $0xc0] sm:$0xff]
    %v870 = vld [vmem:[#allocation4 + $0xc8] sm:$0xff]
    %v871 = vld [vmem:[#allocation4 + $0xd0] sm:$0xff]
    %v872 = vld [vmem:[#allocation4 + $0xd8] sm:$0xff]
    %v873 = vld [vmem:[#allocation4 + $0xe0] sm:$0xff]
    %v874 = vld [vmem:[#allocation4 + $0xe8] sm:$0xff]
    %v875 = vld [vmem:[#allocation4 + $0xf0] sm:$0xff]
    %v876 = vld [vmem:[#allocation4 + $0xf8] sm:$0xff]
    %v877 = vld [vmem:[#allocation4 + $0x100] sm:$0xff]
    %v878 = vld [vmem:[#allocation4 + $0x108] sm:$0xff]
    %v879 = vld [vmem:[#allocation4 + $0x110] sm:$0xff]
    %v880 = vld [vmem:[#allocation4 + $0x118] sm:$0xff]
    %v881 = vld [vmem:[#allocation4 + $0x120] sm:$0xff]
    %v882 = vld [vmem:[#allocation4 + $0x128] sm:$0xff]
    %v883 = vld [vmem:[#allocation4 + $0x130] sm:$0xff]
    %v884 = vld [vmem:[#allocation4 + $0x138] sm:$0xff]
    %v885 = vld [vmem:[#allocation4 + $0x140] sm:$0xff]
    %v886 = vld [vmem:[#allocation4 + $0x148] sm:$0xff]
    %v887 = vld [vmem:[#allocation4 + $0x150] sm:$0xff]
    %v888 = vld [vmem:[#allocation4 + $0x158] sm:$0xff]
    %v889 = vld [vmem:[#allocation4 + $0x160] sm:$0xff]
    %v890 = vld [vmem:[#allocation4 + $0x168] sm:$0xff]
    %v891 = vld [vmem:[#allocation4 + $0x170] sm:$0xff]
    %v892 = vld [vmem:[#allocation4 + $0x178] sm:$0xff]
    %v893 = vld [vmem:[#allocation4 + $0x180] sm:$0xff]
    %v894 = vld [vmem:[#allocation4 + $0x188] sm:$0xff]
    %v895 = vld [vmem:[#allocation4 + $0x190] sm:$0xff]
    %v896 = vld [vmem:[#allocation4 + $0x198] sm:$0xff]
    %v897 = vld [vmem:[#allocation4 + $0x1a0] sm:$0xff]
    %v898 = vld [vmem:[#allocation4 + $0x1a8] sm:$0xff]
    %v899 = vld [vmem:[#allocation4 + $0x1b0] sm:$0xff]
    %v900 = vld [vmem:[#allocation4 + $0x1b8] sm:$0xff]
    %v901 = vld [vmem:[#allocation4 + $0x1c0] sm:$0xff]
    %v902 = vld [vmem:[#allocation4 + $0x1c8] sm:$0xff]
    %v903 = vld [vmem:[#allocation4 + $0x1d0] sm:$0xff]
    %v904 = vld [vmem:[#allocation4 + $0x1d8] sm:$0xff]
    %v905 = vld [vmem:[#allocation4 + $0x1e0] sm:$0xff]
    %v906 = vld [vmem:[#allocation4 + $0x1e8] sm:$0xff]
    %v907 = vld [vmem:[#allocation4 + $0x1f0] sm:$0xff]
    %v908 = vld [vmem:[#allocation4 + $0x1f8] sm:$0xff]
    %v909 = vld [vmem:[#allocation4 + $0x200] sm:$0xff]
    %v910 = vld [vmem:[#allocation4 + $0x208] sm:$0xff]
    %v911 = vld [vmem:[#allocation4 + $0x210] sm:$0xff]
    %v912 = vld [vmem:[#allocation4 + $0x218] sm:$0xff]
    %v913 = vld [vmem:[#allocation4 + $0x220] sm:$0xff]
    %v914 = vld [vmem:[#allocation4 + $0x228] sm:$0xff]
    %v915 = vld [vmem:[#allocation4 + $0x230] sm:$0xff]
    %v916 = vld [vmem:[#allocation4 + $0x238] sm:$0xff]
    %v917 = vld [vmem:[#allocation4 + $0x240] sm:$0xff]
    %v918 = vld [vmem:[#allocation4 + $0x248] sm:$0xff]
    %v919 = vld [vmem:[#allocation4 + $0x250] sm:$0xff]
    %v920 = vld [vmem:[#allocation4 + $0x258] sm:$0xff]
    %v921 = vld [vmem:[#allocation4 + $0x260] sm:$0xff]
    %v922 = vld [vmem:[#allocation4 + $0x268] sm:$0xff]
    %v923 = vld [vmem:[#allocation4 + $0x270] sm:$0xff]
    %v924 = vld [vmem:[#allocation4 + $0x278] sm:$0xff]
    %v925 = vld [vmem:[#allocation4 + $0x280] sm:$0xff]
    %v926 = vld [vmem:[#allocation4 + $0x288] sm:$0xff]
    %v927 = vld [vmem:[#allocation4 + $0x290] sm:$0xff]
    %v928 = vld [vmem:[#allocation4 + $0x298] sm:$0xff]
    %v929 = vld [vmem:[#allocation4 + $0x2a0] sm:$0xff]
    %v930 = vld [vmem:[#allocation4 + $0x2a8] sm:$0xff]
    %v931 = vld [vmem:[#allocation4 + $0x2b0] sm:$0xff]
    %v932 = vld [vmem:[#allocation4 + $0x2b8] sm:$0xff]
    %v933 = vld [vmem:[#allocation4 + $0x2c0] sm:$0xff]
    %v934 = vld [vmem:[#allocation4 + $0x2c8] sm:$0xff]
    %v935 = vld [vmem:[#allocation4 + $0x2d0] sm:$0xff]
    %v936 = vld [vmem:[#allocation4 + $0x2d8] sm:$0xff]
    %v937 = vld [vmem:[#allocation4 + $0x2e0] sm:$0xff]
    %v938 = vld [vmem:[#allocation4 + $0x2e8] sm:$0xff]
    %v939 = vld [vmem:[#allocation4 + $0x2f0] sm:$0xff]
    %v940 = vld [vmem:[#allocation4 + $0x2f8] sm:$0xff]
    %941 = vmatprep.subr.mxu0 %v846
    %942 = vmatpush1.msra.mxu0 %v845
    %943 = vmatprep.subr.mxu0 %v848
    %944 = vmatpush1.msra.mxu0 %v847
    %945 = vmatprep.subr.mxu0 %v850
    %946 = vmatpush1.msra.mxu0 %v849
    %947 = vmatprep.subr.mxu0 %v852
    %948 = vmatpush1.msra.mxu0 %v851
    %949 = vmatprep.subr.mxu0 %v854
    %950 = vmatpush1.msra.mxu0 %v853
    %951 = vmatprep.subr.mxu0 %v856
    %952 = vmatpush1.msra.mxu0 %v855
    %953 = vmatprep.subr.mxu0 %v858
    %954 = vmatpush1.msra.mxu0 %v857
    %955 = vmatprep.subr.mxu0 %v860
    %956 = vmatpush1.msra.mxu0 %v859
    %957 = vmatprep.subr.mxu0 %v862
    %958 = vmatpush1.msra.mxu0 %v861
    %959 = vmatprep.subr.mxu0 %v864
    %960 = vmatpush1.msra.mxu0 %v863
    %961 = vmatprep.subr.mxu0 %v866
    %962 = vmatpush1.msra.mxu0 %v865
    %963 = vmatprep.subr.mxu0 %v868
    %964 = vmatpush1.msra.mxu0 %v867
    %965 = vmatprep.subr.mxu0 %v870
    %966 = vmatpush1.msra.mxu0 %v869
    %967 = vmatprep.subr.mxu0 %v872
    %968 = vmatpush1.msra.mxu0 %v871
    %969 = vmatprep.subr.mxu0 %v874
    %970 = vmatpush1.msra.mxu0 %v873
    %971 = vmatprep.subr.mxu0 %v876
    %972 = vmatpush1.msra.mxu0 %v875
    %973 = vmatprep.subr.mxu0 %v878
    %974 = vmatpush1.msra.mxu0 %v877
    %975 = vmatprep.subr.mxu0 %v880
    %976 = vmatpush1.msra.mxu0 %v879
    %977 = vmatprep.subr.mxu0 %v882
    %978 = vmatpush1.msra.mxu0 %v881
    %979 = vmatprep.subr.mxu0 %v884
    %980 = vmatpush1.msra.mxu0 %v883
    %981 = vmatprep.subr.mxu0 %v886
    %982 = vmatpush1.msra.mxu0 %v885
    %983 = vmatprep.subr.mxu0 %v888
    %984 = vmatpush1.msra.mxu0 %v887
    %985 = vmatprep.subr.mxu0 %v890
    %986 = vmatpush1.msra.mxu0 %v889
    %987 = vmatprep.subr.mxu0 %v892
    %988 = vmatpush1.msra.mxu0 %v891
    %989 = vmatprep.subr.mxu0 %v894
    %990 = vmatpush1.msra.mxu0 %v893
    %991 = vmatprep.subr.mxu0 %v896
    %992 = vmatpush1.msra.mxu0 %v895
    %993 = vmatprep.subr.mxu0 %v898
    %994 = vmatpush1.msra.mxu0 %v897
    %995 = vmatprep.subr.mxu0 %v900
    %996 = vmatpush1.msra.mxu0 %v899
    %997 = vmatprep.subr.mxu0 %v902
    %998 = vmatpush1.msra.mxu0 %v901
    %999 = vmatprep.subr.mxu0 %v904
    %1000 = vmatpush1.msra.mxu0 %v903
    %1001 = vmatprep.subr.mxu0 %v906
    %1002 = vmatpush1.msra.mxu0 %v905
    %1003 = vmatprep.subr.mxu0 %v908
    %1004 = vmatpush1.msra.mxu0 %v907
    %1005 = vmatprep.mubr.f32.mxu0 %v798
    %1006 = vmatmul.mubr.f32.gmra.mrb[0].mxu0 %v797
    %v1007 = vpop.f32.mrb[0].mxu0
    %v1008 = vadd.f32 0.0, %v1007
    %v1009 = vpop.f32.mrb[0].mxu0
    %v1010 = vadd.f32 0.0, %v1009
    %1011 = vmatprep.mubr.f32.mxu0 %v801
    %1012 = vmatmul.mubr.f32.gmra.mrb[0].mxu0 %v800
    %v1013 = vpop.f32.mrb[0].mxu0
    %v1014 = vadd.f32 0.0, %v1013
    %v1015 = vpop.f32.mrb[0].mxu0
    %v1016 = vadd.f32 0.0, %v1015
    %1017 = vmatprep.mubr.f32.mxu0 %v804
    %1018 = vmatmul.mubr.f32.gmra.mrb[0].mxu0 %v803
    %v1019 = vpop.f32.mrb[0].mxu0
    %v1020 = vadd.f32 0.0, %v1019
    %v1021 = vpop.f32.mrb[0].mxu0
    %v1022 = vadd.f32 0.0, %v1021
    %1023 = vmatprep.mubr.f32.mxu0 %v807
    %1024 = vmatmul.mubr.f32.gmra.mrb[0].mxu0 %v806
    %v1025 = vpop.f32.mrb[0].mxu0
    %v1026 = vadd.f32 0.0, %v1025
    %v1027 = vpop.f32.mrb[0].mxu0
    %v1028 = vadd.f32 0.0, %v1027
    %1029 = vmatprep.mubr.f32.mxu0 %v810
    %1030 = vmatmul.mubr.f32.gmra.mrb[0].mxu0 %v809
    %v1031 = vpop.f32.mrb[0].mxu0
    %v1032 = vadd.f32 0.0, %v1031
    %v1033 = vpop.f32.mrb[0].mxu0
    %v1034 = vadd.f32 0.0, %v1033
    %1035 = vmatprep.mubr.f32.mxu0 %v813
    %1036 = vmatmul.mubr.f32.gmra.mrb[0].mxu0 %v812
    %v1037 = vpop.f32.mrb[0].mxu0
    %v1038 = vadd.f32 0.0, %v1037
    %v1039 = vpop.f32.mrb[0].mxu0
    %v1040 = vadd.f32 0.0, %v1039
    %1041 = vmatprep.mubr.f32.mxu0 %v816
    %1042 = vmatmul.mubr.f32.gmra.mrb[0].mxu0 %v815
    %v1043 = vpop.f32.mrb[0].mxu0
    %v1044 = vadd.f32 0.0, %v1043
    %v1045 = vpop.f32.mrb[0].mxu0
    %v1046 = vadd.f32 0.0, %v1045
    %1047 = vmatprep.mubr.f32.mxu0 %v819
    %1048 = vmatmul.mubr.f32.gmra.mrb[0].mxu0 %v818
    %v1049 = vpop.f32.mrb[0].mxu0
    %v1050 = vadd.f32 0.0, %v1049
    %v1051 = vpop.f32.mrb[0].mxu0
    %v1052 = vadd.f32 0.0, %v1051
    %1053 = vmatprep.mubr.f32.mxu0 %v822
    %1054 = vmatmul.mubr.f32.gmra.mrb[0].mxu0 %v821
    %v1055 = vpop.f32.mrb[0].mxu0
    %v1056 = vadd.f32 0.0, %v1055
    %v1057 = vpop.f32.mrb[0].mxu0
    %v1058 = vadd.f32 0.0, %v1057
    %1059 = vmatprep.mubr.f32.mxu0 %v825
    %1060 = vmatmul.mubr.f32.gmra.mrb[0].mxu0 %v824
    %v1061 = vpop.f32.mrb[0].mxu0
    %v1062 = vadd.f32 0.0, %v1061
    %v1063 = vpop.f32.mrb[0].mxu0
    %v1064 = vadd.f32 0.0, %v1063
    %1065 = vmatprep.mubr.f32.mxu0 %v828
    %1066 = vmatmul.mubr.f32.gmra.mrb[0].mxu0 %v827
    %v1067 = vpop.f32.mrb[0].mxu0
    %v1068 = vadd.f32 0.0, %v1067
    %v1069 = vpop.f32.mrb[0].mxu0
    %v1070 = vadd.f32 0.0, %v1069
    %1071 = vmatprep.mubr.f32.mxu0 %v831
    %1072 = vmatmul.mubr.f32.gmra.mrb[0].mxu0 %v830
    %v1073 = vpop.f32.mrb[0].mxu0
    %v1074 = vadd.f32 0.0, %v1073
    %v1075 = vpop.f32.mrb[0].mxu0
    %v1076 = vadd.f32 0.0, %v1075
    %1077 = vmatprep.mubr.f32.mxu0 %v834
    %1078 = vmatmul.mubr.f32.gmra.mrb[0].mxu0 %v833
    %v1079 = vpop.f32.mrb[0].mxu0
    %v1080 = vadd.f32 0.0, %v1079
    %v1081 = vpop.f32.mrb[0].mxu0
    %v1082 = vadd.f32 0.0, %v1081
    %1083 = vmatprep.mubr.f32.mxu0 %v837
    %1084 = vmatmul.mubr.f32.gmra.mrb[0].mxu0 %v836
    %v1085 = vpop.f32.mrb[0].mxu0
    %v1086 = vadd.f32 0.0, %v1085
    %v1087 = vpop.f32.mrb[0].mxu0
    %v1088 = vadd.f32 0.0, %v1087
    %1089 = vmatprep.mubr.f32.mxu0 %v840
    %1090 = vmatmul.mubr.f32.gmra.mrb[0].mxu0 %v839
    %v1091 = vpop.f32.mrb[0].mxu0
    %v1092 = vadd.f32 0.0, %v1091
    %v1093 = vpop.f32.mrb[0].mxu0
    %v1094 = vadd.f32 0.0, %v1093
    %1095 = vmatprep.mubr.f32.mxu0 %v843
    %1096 = vmatmul.mubr.f32.gmra.mrb[0].mxu0 %v842
    %v1097 = vpop.f32.mrb[0].mxu0
    %v1098 = vadd.f32 0.0, %v1097
    %v1099 = vpop.f32.mrb[0].mxu0
    %v1100 = vadd.f32 0.0, %v1099
    %1101 = vdwg.mxu0
    %1102 = vmatprep.subr.mxu0 %v910
    %1103 = vmatpush1.msra.mxu0 %v909
    %1104 = vmatprep.subr.mxu0 %v912
    %1105 = vmatpush1.msra.mxu0 %v911
    %1106 = vmatprep.subr.mxu0 %v914
    %1107 = vmatpush1.msra.mxu0 %v913
    %1108 = vmatprep.subr.mxu0 %v916
    %1109 = vmatpush1.msra.mxu0 %v915
    %1110 = vmatprep.subr.mxu0 %v918
    %1111 = vmatpush1.msra.mxu0 %v917
    %1112 = vmatprep.subr.mxu0 %v920
    %1113 = vmatpush1.msra.mxu0 %v919
    %1114 = vmatprep.subr.mxu0 %v922
    %1115 = vmatpush1.msra.mxu0 %v921
    %1116 = vmatprep.subr.mxu0 %v924
    %1117 = vmatpush1.msra.mxu0 %v923
    %1118 = vmatprep.subr.mxu0 %v926
    %1119 = vmatpush1.msra.mxu0 %v925
    %1120 = vmatprep.subr.mxu0 %v928
    %1121 = vmatpush1.msra.mxu0 %v927
    %1122 = vmatprep.subr.mxu0 %v930
    %1123 = vmatpush1.msra.mxu0 %v929
    %1124 = vmatprep.subr.mxu0 %v932
    %1125 = vmatpush1.msra.mxu0 %v931
    %1126 = vmatprep.subr.mxu0 %v934
    %1127 = vmatpush1.msra.mxu0 %v933
    %1128 = vmatprep.subr.mxu0 %v936
    %1129 = vmatpush1.msra.mxu0 %v935
    %1130 = vmatprep.subr.mxu0 %v938
    %1131 = vmatpush1.msra.mxu0 %v937
    %1132 = vmatprep.subr.mxu0 %v940
    %1133 = vmatpush1.msra.mxu0 %v939
    %1134 = vmatprep.subr.mxu0 0.0
    %1135 = vmatpush1.msra.mxu0 0.0
    %1136 = vmatprep.subr.mxu0 0.0
    %1137 = vmatpush1.msra.mxu0 0.0
    %1138 = vmatprep.subr.mxu0 0.0
    %1139 = vmatpush1.msra.mxu0 0.0
    %1140 = vmatprep.subr.mxu0 0.0
    %1141 = vmatpush1.msra.mxu0 0.0
    %1142 = vmatprep.subr.mxu0 0.0
    %1143 = vmatpush1.msra.mxu0 0.0
    %1144 = vmatprep.subr.mxu0 0.0
    %1145 = vmatpush1.msra.mxu0 0.0
    %1146 = vmatprep.subr.mxu0 0.0
    %1147 = vmatpush1.msra.mxu0 0.0
    %1148 = vmatprep.subr.mxu0 0.0
    %1149 = vmatpush1.msra.mxu0 0.0
    %1150 = vmatprep.subr.mxu0 0.0
    %1151 = vmatpush1.msra.mxu0 0.0
    %1152 = vmatprep.subr.mxu0 0.0
    %1153 = vmatpush1.msra.mxu0 0.0
    %1154 = vmatprep.subr.mxu0 0.0
    %1155 = vmatpush1.msra.mxu0 0.0
    %1156 = vmatprep.subr.mxu0 0.0
    %1157 = vmatpush1.msra.mxu0 0.0
    %1158 = vmatprep.subr.mxu0 0.0
    %1159 = vmatpush1.msra.mxu0 0.0
    %1160 = vmatprep.subr.mxu0 0.0
    %1161 = vmatpush1.msra.mxu0 0.0
    %1162 = vmatprep.subr.mxu0 0.0
    %1163 = vmatpush1.msra.mxu0 0.0
    %1164 = vmatprep.subr.mxu0 0.0
    %1165 = vmatpush1.msra.mxu0 0.0
    %1166 = vmatprep.mubr.f32.mxu0 0.0
    %1167 = vmatmul.mubr.f32.gmra.mrb[0].mxu0 %v799
    %v1168 = vpop.f32.mrb[0].mxu0
    %v1169 = vadd.f32 %v1008, %v1168
    %v1170 = vpop.f32.mrb[0].mxu0
    %v1171 = vadd.f32 %v1010, %v1170
    %1172 = vmatprep.mubr.f32.mxu0 0.0
    %1173 = vmatmul.mubr.f32.gmra.mrb[0].mxu0 %v802
    %v1174 = vpop.f32.mrb[0].mxu0
    %v1175 = vadd.f32 %v1014, %v1174
    %v1176 = vpop.f32.mrb[0].mxu0
    %v1177 = vadd.f32 %v1016, %v1176
    %1178 = vmatprep.mubr.f32.mxu0 0.0
    %1179 = vmatmul.mubr.f32.gmra.mrb[0].mxu0 %v805
    %v1180 = vpop.f32.mrb[0].mxu0
    %v1181 = vadd.f32 %v1020, %v1180
    %v1182 = vpop.f32.mrb[0].mxu0
    %v1183 = vadd.f32 %v1022, %v1182
    %1184 = vmatprep.mubr.f32.mxu0 0.0
    %1185 = vmatmul.mubr.f32.gmra.mrb[0].mxu0 %v808
    %v1186 = vpop.f32.mrb[0].mxu0
    %v1187 = vadd.f32 %v1026, %v1186
    %v1188 = vpop.f32.mrb[0].mxu0
    %v1189 = vadd.f32 %v1028, %v1188
    %1190 = vmatprep.mubr.f32.mxu0 0.0
    %1191 = vmatmul.mubr.f32.gmra.mrb[0].mxu0 %v811
    %v1192 = vpop.f32.mrb[0].mxu0
    %v1193 = vadd.f32 %v1032, %v1192
    %v1194 = vpop.f32.mrb[0].mxu0
    %v1195 = vadd.f32 %v1034, %v1194
    %1196 = vmatprep.mubr.f32.mxu0 0.0
    %1197 = vmatmul.mubr.f32.gmra.mrb[0].mxu0 %v814
    %v1198 = vpop.f32.mrb[0].mxu0
    %v1199 = vadd.f32 %v1038, %v1198
    %v1200 = vpop.f32.mrb[0].mxu0
    %v1201 = vadd.f32 %v1040, %v1200
    %1202 = vmatprep.mubr.f32.mxu0 0.0
    %1203 = vmatmul.mubr.f32.gmra.mrb[0].mxu0 %v817
    %v1204 = vpop.f32.mrb[0].mxu0
    %v1205 = vadd.f32 %v1044, %v1204
    %v1206 = vpop.f32.mrb[0].mxu0
    %v1207 = vadd.f32 %v1046, %v1206
    %1208 = vmatprep.mubr.f32.mxu0 0.0
    %1209 = vmatmul.mubr.f32.gmra.mrb[0].mxu0 %v820
    %v1210 = vpop.f32.mrb[0].mxu0
    %v1211 = vadd.f32 %v1050, %v1210
    %v1212 = vpop.f32.mrb[0].mxu0
    %v1213 = vadd.f32 %v1052, %v1212
    %1214 = vmatprep.mubr.f32.mxu0 0.0
    %1215 = vmatmul.mubr.f32.gmra.mrb[0].mxu0 %v823
    %v1216 = vpop.f32.mrb[0].mxu0
    %v1217 = vadd.f32 %v1056, %v1216
    %v1218 = vpop.f32.mrb[0].mxu0
    %v1219 = vadd.f32 %v1058, %v1218
    %1220 = vmatprep.mubr.f32.mxu0 0.0
    %1221 = vmatmul.mubr.f32.gmra.mrb[0].mxu0 %v826
    %v1222 = vpop.f32.mrb[0].mxu0
    %v1223 = vadd.f32 %v1062, %v1222
    %v1224 = vpop.f32.mrb[0].mxu0
    %v1225 = vadd.f32 %v1064, %v1224
    %1226 = vmatprep.mubr.f32.mxu0 0.0
    %1227 = vmatmul.mubr.f32.gmra.mrb[0].mxu0 %v829
    %v1228 = vpop.f32.mrb[0].mxu0
    %v1229 = vadd.f32 %v1068, %v1228
    %v1230 = vpop.f32.mrb[0].mxu0
    %v1231 = vadd.f32 %v1070, %v1230
    %1232 = vmatprep.mubr.f32.mxu0 0.0
    %1233 = vmatmul.mubr.f32.gmra.mrb[0].mxu0 %v832
    %v1234 = vpop.f32.mrb[0].mxu0
    %v1235 = vadd.f32 %v1074, %v1234
    %v1236 = vpop.f32.mrb[0].mxu0
    %v1237 = vadd.f32 %v1076, %v1236
    %1238 = vmatprep.mubr.f32.mxu0 0.0
    %1239 = vmatmul.mubr.f32.gmra.mrb[0].mxu0 %v835
    %v1240 = vpop.f32.mrb[0].mxu0
    %v1241 = vadd.f32 %v1080, %v1240
    %v1242 = vpop.f32.mrb[0].mxu0
    %v1243 = vadd.f32 %v1082, %v1242
    %1244 = vmatprep.mubr.f32.mxu0 0.0
    %1245 = vmatmul.mubr.f32.gmra.mrb[0].mxu0 %v838
    %v1246 = vpop.f32.mrb[0].mxu0
    %v1247 = vadd.f32 %v1086, %v1246
    %v1248 = vpop.f32.mrb[0].mxu0
    %v1249 = vadd.f32 %v1088, %v1248
    %1250 = vmatprep.mubr.f32.mxu0 0.0
    %1251 = vmatmul.mubr.f32.gmra.mrb[0].mxu0 %v841
    %v1252 = vpop.f32.mrb[0].mxu0
    %v1253 = vadd.f32 %v1092, %v1252
    %v1254 = vpop.f32.mrb[0].mxu0
    %v1255 = vadd.f32 %v1094, %v1254
    %1256 = vmatprep.mubr.f32.mxu0 0.0
    %1257 = vmatmul.mubr.f32.gmra.mrb[0].mxu0 %v844
    %v1258 = vpop.f32.mrb[0].mxu0
    %v1259 = vadd.f32 %v1098, %v1258
    %v1260 = vpop.f32.mrb[0].mxu0
    %v1261 = vadd.f32 %v1100, %v1260
    %1262 = vdwg.mxu0
    %1263 = vst [vmem:[%s3] sm:$0xff] %v1169
    %1264 = vst [vmem:[%s3 + $0x8] sm:$0xff] %v1171
    %1265 = vst [vmem:[%s3 + $0x10] sm:$0xff] %v1175
    %1266 = vst [vmem:[%s3 + $0x18] sm:$0xff] %v1177
    %1267 = vst [vmem:[%s3 + $0x20] sm:$0xff] %v1181
    %1268 = vst [vmem:[%s3 + $0x28] sm:$0xff] %v1183
    %1269 = vst [vmem:[%s3 + $0x30] sm:$0xff] %v1187
    %1270 = vst [vmem:[%s3 + $0x38] sm:$0xff] %v1189
    %1271 = vst [vmem:[%s3 + $0x40] sm:$0xff] %v1193
    %1272 = vst [vmem:[%s3 + $0x48] sm:$0xff] %v1195
    %1273 = vst [vmem:[%s3 + $0x50] sm:$0xff] %v1199
    %1274 = vst [vmem:[%s3 + $0x58] sm:$0xff] %v1201
    %1275 = vst [vmem:[%s3 + $0x60] sm:$0xff] %v1205
    %1276 = vst [vmem:[%s3 + $0x68] sm:$0xff] %v1207
    %1277 = vst [vmem:[%s3 + $0x70] sm:$0xff] %v1211
    %1278 = vst [vmem:[%s3 + $0x78] sm:$0xff] %v1213
    %1279 = vst [vmem:[%s3 + $0x80] sm:$0xff] %v1217
    %1280 = vst [vmem:[%s3 + $0x88] sm:$0xff] %v1219
    %1281 = vst [vmem:[%s3 + $0x90] sm:$0xff] %v1223
    %1282 = vst [vmem:[%s3 + $0x98] sm:$0xff] %v1225
    %1283 = vst [vmem:[%s3 + $0xa0] sm:$0xff] %v1229
    %1284 = vst [vmem:[%s3 + $0xa8] sm:$0xff] %v1231
    %1285 = vst [vmem:[%s3 + $0xb0] sm:$0xff] %v1235
    %1286 = vst [vmem:[%s3 + $0xb8] sm:$0xff] %v1237
    %1287 = vst [vmem:[%s3 + $0xc0] sm:$0xff] %v1241
    %1288 = vst [vmem:[%s3 + $0xc8] sm:$0xff] %v1243
    %1289 = vst [vmem:[%s3 + $0xd0] sm:$0xff] %v1247
    %1290 = vst [vmem:[%s3 + $0xd8] sm:$0xff] %v1249
    %1291 = vst [vmem:[%s3 + $0xe0] sm:$0xff] %v1253
    %1292 = vst [vmem:[%s3 + $0xe8] sm:$0xff] %v1255
    %1293 = vst [vmem:[%s3 + $0xf0] sm:$0xff] %v1259
    %1294 = vst [vmem:[%s3 + $0xf8] sm:$0xff] %v1261
    // Predicated region
    $region22: #{_forward.1} parent=1 // pred_check
      _
    $region23: #{_forward.1} parent=1 // pred_check_branch
      %1296 = sbr.rel (0) target = $region25
    $region24: #{_forward.1} parent=1 // pred_region
      _
    $region25: #{_forward.1} parent=1 // pred_fallthru
      _
    // Predicated region
    $region26: #{_forward.1} parent=1 // pred_check
      _
    $region27: #{_forward.1} parent=1 // pred_check_branch
      %1298 = sbr.rel (0) target = $region29
    $region28: #{_forward.1} parent=1 // pred_region
      _
    $region29: #{_forward.1} parent=1 // pred_fallthru
      _
    %1299 = vsyncpa [#allocation3], 1
    %1300 = vsyncpa [#allocation5], 1

</llo_original>
